<compile_context>
chip_gen: v7x
topology: tpu7x:2x2x1
jax: 0.10.0
libtpu: 0.0.40
codegen_flags: <defaults>
</compile_context>

<pallas_src>
import jax
import jax.numpy as jnp
import numpy as np
from jax.experimental import pallas as pl
from jax.experimental.pallas import tpu as pltpu


def _er_head_kernel(off_ref,                      # SMEM (B_pad, 5) int32 (scalar prefetch)
                    emb_ref,                      # VMEM (TB, S, H) f32 block
                    w1a_ref, w1b_ref, w1p_ref,    # VMEM (H, D) f32, BN-folded
                    b1_ref,                       # VMEM (1, D) f32, BN-folded
                    w2_ref,                       # VMEM (D, NP) f32, lane-padded
                    b2_ref,                       # VMEM (1, NP) f32, lane-padded
                    out_ref):                     # VMEM (TB, NP) f32 block
    TB, S, H = emb_ref.shape
    base = pl.program_id(0) * TB

    # Build one (TB, 3, S) gather operand from SMEM scalars:
    #   plane 0: 1/|span A| over span A, plane 1: 1/|span B| over span B,
    #   plane 2: 1.0 at the pronoun index.
    # Folding 1/len into the weights lets a single batched MXU contraction
    # produce the span means directly (one pass over emb instead of three).
    row = jax.lax.broadcasted_iota(jnp.int32, (TB, 3, S), 0)
    sel = jax.lax.broadcasted_iota(jnp.int32, (TB, 3, S), 1)
    col = jax.lax.broadcasted_iota(jnp.int32, (TB, 3, S), 2)

    masks = jnp.zeros((TB, 3, S), jnp.float32)
    for r in range(TB):                           # static unroll; TB is small
        a_s = off_ref[base + r, 0]
        a_e = off_ref[base + r, 1]
        b_s = off_ref[base + r, 2]
        b_e = off_ref[base + r, 3]
        p_i = off_ref[base + r, 4]
        # max(.,1) guards empty spans (padding rows); valid inputs unchanged.
        inv_a = 1.0 / jnp.maximum(a_e - a_s, 1).astype(jnp.float32)
        inv_b = 1.0 / jnp.maximum(b_e - b_s, 1).astype(jnp.float32)
        hit = (row == r) & (
            ((sel == 0) & (col >= a_s) & (col < a_e))
            | ((sel == 1) & (col >= b_s) & (col < b_e))
            | ((sel == 2) & (col == p_i)))
        val = jnp.where(sel == 0, inv_a, jnp.where(sel == 1, inv_b, 1.0))
        masks = jnp.where(hit, val, masks)

    emb = emb_ref[...]                                        # (TB, S, H)
    # (TB, 3, S) x (TB, S, H) -> (TB, 3, H): batched MXU contraction over S.
    gathered = jax.lax.dot_general(
        masks, emb,
        dimension_numbers=(((2,), (1,)), ((0,), (0,))),
        preferred_element_type=jnp.float32)

    emb_a = gathered[:, 0, :]                                 # (TB, H) mean span A
    emb_b = gathered[:, 1, :]                                 # (TB, H) mean span B
    emb_p = gathered[:, 2, :]                                 # (TB, H) pronoun token

    # Linear(3H, D) with eval-mode BatchNorm folded into weights/bias.
    h = (jnp.dot(emb_a, w1a_ref[...], preferred_element_type=jnp.float32)
         + jnp.dot(emb_b, w1b_ref[...], preferred_element_type=jnp.float32)
         + jnp.dot(emb_p, w1p_ref[...], preferred_element_type=jnp.float32)
         + b1_ref[...])                                       # (TB, D)

    # LeakyReLU (negative_slope = 0.01). Dropout: identity at inference.
    h = jnp.where(h > 0, h, 0.01 * h)

    # classifier Linear(D, num_output), lane-padded to NP for dense stores.
    out_ref[...] = (jnp.dot(h, w2_ref[...], preferred_element_type=jnp.float32)
                    + b2_ref[...])


def entity_resolution_head(bert_outputs, offsets,
                           w1, b1, gamma, beta, rmean, rvar, w2, b2,
                           *, block_b=8, bn_eps=1e-5):
    B, S, H = bert_outputs.shape
    D = w1.shape[1]
    O = w2.shape[1]

    # ---- trace-time preprocessing (done once per weight set) ----------------
    # Fold eval-mode BatchNorm1d into the first Linear.
    scale = gamma.reshape(1, D) * jax.lax.rsqrt(rvar.reshape(1, D) + bn_eps)
    w1f = (w1 * scale).astype(jnp.float32)                    # (3H, D)
    b1f = ((b1.reshape(1, D) - rmean.reshape(1, D)) * scale
           + beta.reshape(1, D)).astype(jnp.float32)          # (1, D)
    w1a = w1f[0:H]
    w1b = w1f[H:2 * H]
    w1p = w1f[2 * H:3 * H]

    # Lane-dense classifier: pad num_output up to a multiple of 128.
    NP = ((O + 127) // 128) * 128
    w2p = jnp.zeros((D, NP), jnp.float32).at[:, :O].set(w2.astype(jnp.float32))
    b2p = jnp.zeros((1, NP), jnp.float32).at[:, :O].set(
        b2.reshape(1, O).astype(jnp.float32))

    # Pad the batch to a multiple of TB (>= 8 so the matmul M fills sublanes).
    # Note: on v7x (64 MiB VMEM) keep TB*S*H*4B*2 (double buffer) well under
    # the per-core budget; shrink block_b for very large S*H.
    TB = block_b
    B_pad = ((B + TB - 1) // TB) * TB
    if B_pad != B:
        bert_outputs = jnp.pad(bert_outputs, ((0, B_pad - B), (0, 0), (0, 0)))
        offsets = jnp.pad(offsets, ((0, B_pad - B), (0, 0)))
    emb = bert_outputs.astype(jnp.float32)
    offsets = offsets.astype(jnp.int32)

    const = lambda b, off: (0, 0)
    grid_spec = pltpu.PrefetchScalarGridSpec(
        num_scalar_prefetch=1,
        grid=(B_pad // TB,),
        in_specs=[
            pl.BlockSpec((TB, S, H), lambda b, off: (b, 0, 0)),  # emb (pipelined)
            pl.BlockSpec((H, D), const),                         # w1a (resident)
            pl.BlockSpec((H, D), const),                         # w1b
            pl.BlockSpec((H, D), const),                         # w1p
            pl.BlockSpec((1, D), const),                         # b1 (folded)
            pl.BlockSpec((D, NP), const),                        # w2 (padded)
            pl.BlockSpec((1, NP), const),                        # b2 (padded)
        ],
        out_specs=pl.BlockSpec((TB, NP), lambda b, off: (b, 0)),
    )

    # Rough VMEM budget: double-buffered emb + resident weights + output.
    est_bytes = 4 * (2 * TB * S * H
                     + (3 * H * D + D + D * NP + NP)
                     + 2 * TB * NP)
    vmem_limit = int(min(100 * 2**20, max(16 * 2**20, 2 * est_bytes)))

    out = pl.pallas_call(
        _er_head_kernel,
        grid_spec=grid_spec,
        out_shape=jax.ShapeDtypeStruct((B_pad, NP), jnp.float32),
        compiler_params=pltpu.CompilerParams(
            dimension_semantics=("parallel",),
            vmem_limit_bytes=vmem_limit),
    )(offsets, emb, w1a, w1b, w1p, b1f, w2p, b2p)

    return out[:B, :O]


def reference(bert_outputs, offsets, w1, b1, gamma, beta, rmean, rvar, w2, b2):
    """Pure-JAX reference mirroring the PyTorch forward (eval mode)."""
    B, S, H = bert_outputs.shape
    pos = jnp.arange(S)[None, :]
    off = offsets
    m_a = ((pos >= off[:, 0:1]) & (pos < off[:, 1:2])).astype(jnp.float32)
    m_b = ((pos >= off[:, 2:3]) & (pos < off[:, 3:4])).astype(jnp.float32)
    m_p = (pos == off[:, 4:5]).astype(jnp.float32)
    e_a = jnp.sum(bert_outputs * m_a[:, :, None], 1) / jnp.sum(m_a, 1, keepdims=True)
    e_b = jnp.sum(bert_outputs * m_b[:, :, None], 1) / jnp.sum(m_b, 1, keepdims=True)
    e_p = jnp.sum(bert_outputs * m_p[:, :, None], 1)
    x = jnp.concatenate([e_a, e_b, e_p], axis=1)
    h = x @ w1 + b1
    h = (h - rmean) / jnp.sqrt(rvar + 1e-5) * gamma + beta
    h = jnp.where(h > 0, h, 0.01 * h)
    return h @ w2 + b2


if __name__ == "__main__":
    # Small, deterministic shapes consistent with the module.
    B, S, H = 2, 16, 32          # batch, seq len, bert_hidden_size
    D, O = 64, 3                 # head_hidden_size, num_output
    IN = 3 * H                   # output_strategy != 'concat'

    key = jax.random.PRNGKey(0)
    k = jax.random.split(key, 8)

    bert_outputs = jax.random.normal(k[0], (B, S, H), jnp.float32)
    # [A_start, A_end, B_start, B_end, pron_idx] per example (valid, in-range).
    offsets = jnp.array([[1, 3, 5, 8, 10],
                         [0, 2, 6, 9, 12]], dtype=jnp.int32)

    w1 = jax.random.normal(k[1], (IN, D), jnp.float32) * 0.05
    b1 = jax.random.normal(k[2], (1, D), jnp.float32) * 0.01
    gamma = 1.0 + 0.1 * jax.random.normal(k[3], (1, D), jnp.float32)
    beta = 0.1 * jax.random.normal(k[4], (1, D), jnp.float32)
    rmean = 0.1 * jax.random.normal(k[5], (1, D), jnp.float32)
    rvar = jnp.abs(jax.random.normal(k[6], (1, D), jnp.float32)) + 0.5
    w2 = jax.random.normal(k[7], (D, O), jnp.float32) * 0.05
    b2 = jnp.zeros((1, O), jnp.float32)

    out = entity_resolution_head(bert_outputs, offsets,
                                 w1, b1, gamma, beta, rmean, rvar, w2, b2)
    out = jax.block_until_ready(out)

    ref = reference(bert_outputs, offsets,
                    w1, b1, gamma, beta, rmean, rvar, w2, b2)
    assert out.shape == (B, O)
    np.testing.assert_allclose(np.asarray(out), np.asarray(ref),
                               rtol=1e-4, atol=1e-4)
    print("KERNEL_OK")
</pallas_src>

<mosaic_0001>
module attributes {stable_mosaic.version = 11 : i64} {
  func.func @_er_head_kernel(%arg0: i32, %arg1: memref<8x5xi32, #tpu.memory_space<smem>>, %arg2: memref<8x16x32xf32, #tpu.memory_space<vmem>>, %arg3: memref<32x64xf32, #tpu.memory_space<vmem>>, %arg4: memref<32x64xf32, #tpu.memory_space<vmem>>, %arg5: memref<32x64xf32, #tpu.memory_space<vmem>>, %arg6: memref<1x64xf32, #tpu.memory_space<vmem>>, %arg7: memref<64x128xf32, #tpu.memory_space<vmem>>, %arg8: memref<1x128xf32, #tpu.memory_space<vmem>>, %arg9: memref<8x128xf32, #tpu.memory_space<vmem>>) attributes {dimension_semantics = [#tpu.dimension_semantics<parallel>], iteration_bounds = array<i64: 1>, scalar_prefetch = 1 : i64, scratch_operands = 0 : i64, tpu.core_type = #tpu.core_type<tc>, window_params = [{transform_indices = @transform_0, window_bounds = array<i64: 8, 16, 32>}, {pipeline_mode = #tpu.pipeline_mode<synchronous>, transform_indices = @transform_1, window_bounds = array<i64: 32, 64>}, {pipeline_mode = #tpu.pipeline_mode<synchronous>, transform_indices = @transform_2, window_bounds = array<i64: 32, 64>}, {pipeline_mode = #tpu.pipeline_mode<synchronous>, transform_indices = @transform_3, window_bounds = array<i64: 32, 64>}, {pipeline_mode = #tpu.pipeline_mode<synchronous>, transform_indices = @transform_4, window_bounds = array<i64: 1, 64>}, {pipeline_mode = #tpu.pipeline_mode<synchronous>, transform_indices = @transform_5, window_bounds = array<i64: 64, 128>}, {pipeline_mode = #tpu.pipeline_mode<synchronous>, transform_indices = @transform_6, window_bounds = array<i64: 1, 128>}, {transform_indices = @transform_7, window_bounds = array<i64: 8, 128>}]} {
    %c8_i32 = arith.constant 8 : i32
    %0 = arith.muli %arg0, %c8_i32 : i32
    %1 = tpu.iota {dimensions = array<i32: 0>} : vector<8x3x16xi32>
    %2 = tpu.iota {dimensions = array<i32: 1>} : vector<8x3x16xi32>
    %3 = tpu.iota {dimensions = array<i32: 2>} : vector<8x3x16xi32>
    %cst = arith.constant 0.000000e+00 : f32
    %4 = vector.broadcast %cst : f32 to vector<8x3x16xf32>
    %c0_i32 = arith.constant 0 : i32
    %5 = arith.addi %0, %c0_i32 : i32
    %6 = arith.index_cast %5 : i32 to index
    %c0 = arith.constant 0 : index
    %7 = memref.load %arg1[%6, %c0] : memref<8x5xi32, #tpu.memory_space<smem>>
    %c0_i32_0 = arith.constant 0 : i32
    %8 = arith.addi %0, %c0_i32_0 : i32
    %9 = arith.index_cast %8 : i32 to index
    %c1 = arith.constant 1 : index
    %10 = memref.load %arg1[%9, %c1] : memref<8x5xi32, #tpu.memory_space<smem>>
    %c0_i32_1 = arith.constant 0 : i32
    %11 = arith.addi %0, %c0_i32_1 : i32
    %12 = arith.index_cast %11 : i32 to index
    %c2 = arith.constant 2 : index
    %13 = memref.load %arg1[%12, %c2] : memref<8x5xi32, #tpu.memory_space<smem>>
    %c0_i32_2 = arith.constant 0 : i32
    %14 = arith.addi %0, %c0_i32_2 : i32
    %15 = arith.index_cast %14 : i32 to index
    %c3 = arith.constant 3 : index
    %16 = memref.load %arg1[%15, %c3] : memref<8x5xi32, #tpu.memory_space<smem>>
    %c0_i32_3 = arith.constant 0 : i32
    %17 = arith.addi %0, %c0_i32_3 : i32
    %18 = arith.index_cast %17 : i32 to index
    %c4 = arith.constant 4 : index
    %19 = memref.load %arg1[%18, %c4] : memref<8x5xi32, #tpu.memory_space<smem>>
    %20 = arith.subi %10, %7 : i32
    %c1_i32 = arith.constant 1 : i32
    %21 = arith.maxsi %20, %c1_i32 : i32
    %22 = arith.sitofp %21 : i32 to f32
    %cst_4 = arith.constant 1.000000e+00 : f32
    %23 = arith.divf %cst_4, %22 : f32
    %24 = arith.subi %16, %13 : i32
    %c1_i32_5 = arith.constant 1 : i32
    %25 = arith.maxsi %24, %c1_i32_5 : i32
    %26 = arith.sitofp %25 : i32 to f32
    %cst_6 = arith.constant 1.000000e+00 : f32
    %27 = arith.divf %cst_6, %26 : f32
    %c0_i32_7 = arith.constant 0 : i32
    %28 = vector.broadcast %c0_i32_7 : i32 to vector<8x3x16xi32>
    %29 = arith.cmpi eq, %1, %28 : vector<8x3x16xi32>
    %c0_i32_8 = arith.constant 0 : i32
    %30 = vector.broadcast %c0_i32_8 : i32 to vector<8x3x16xi32>
    %31 = arith.cmpi eq, %2, %30 : vector<8x3x16xi32>
    %32 = vector.broadcast %7 : i32 to vector<8x3x16xi32>
    %33 = arith.cmpi sge, %3, %32 : vector<8x3x16xi32>
    %34 = arith.andi %31, %33 : vector<8x3x16xi1>
    %35 = vector.broadcast %10 : i32 to vector<8x3x16xi32>
    %36 = arith.cmpi slt, %3, %35 : vector<8x3x16xi32>
    %37 = arith.andi %34, %36 : vector<8x3x16xi1>
    %c1_i32_9 = arith.constant 1 : i32
    %38 = vector.broadcast %c1_i32_9 : i32 to vector<8x3x16xi32>
    %39 = arith.cmpi eq, %2, %38 : vector<8x3x16xi32>
    %40 = vector.broadcast %13 : i32 to vector<8x3x16xi32>
    %41 = arith.cmpi sge, %3, %40 : vector<8x3x16xi32>
    %42 = arith.andi %39, %41 : vector<8x3x16xi1>
    %43 = vector.broadcast %16 : i32 to vector<8x3x16xi32>
    %44 = arith.cmpi slt, %3, %43 : vector<8x3x16xi32>
    %45 = arith.andi %42, %44 : vector<8x3x16xi1>
    %46 = arith.ori %37, %45 : vector<8x3x16xi1>
    %c2_i32 = arith.constant 2 : i32
    %47 = vector.broadcast %c2_i32 : i32 to vector<8x3x16xi32>
    %48 = arith.cmpi eq, %2, %47 : vector<8x3x16xi32>
    %49 = vector.broadcast %19 : i32 to vector<8x3x16xi32>
    %50 = arith.cmpi eq, %3, %49 : vector<8x3x16xi32>
    %51 = arith.andi %48, %50 : vector<8x3x16xi1>
    %52 = arith.ori %46, %51 : vector<8x3x16xi1>
    %53 = arith.andi %29, %52 : vector<8x3x16xi1>
    %c0_i32_10 = arith.constant 0 : i32
    %54 = vector.broadcast %c0_i32_10 : i32 to vector<8x3x16xi32>
    %55 = arith.cmpi eq, %2, %54 : vector<8x3x16xi32>
    %c1_i32_11 = arith.constant 1 : i32
    %56 = vector.broadcast %c1_i32_11 : i32 to vector<8x3x16xi32>
    %57 = arith.cmpi eq, %2, %56 : vector<8x3x16xi32>
    %cst_12 = arith.constant 1.000000e+00 : f32
    %58 = vector.broadcast %27 : f32 to vector<8x3x16xf32>
    %59 = vector.broadcast %cst_12 : f32 to vector<8x3x16xf32>
    %60 = arith.select %57, %58, %59 : vector<8x3x16xi1>, vector<8x3x16xf32>
    %61 = vector.broadcast %23 : f32 to vector<8x3x16xf32>
    %62 = arith.select %55, %61, %60 : vector<8x3x16xi1>, vector<8x3x16xf32>
    %63 = arith.select %53, %62, %4 : vector<8x3x16xi1>, vector<8x3x16xf32>
    %c1_i32_13 = arith.constant 1 : i32
    %64 = arith.addi %0, %c1_i32_13 : i32
    %65 = arith.index_cast %64 : i32 to index
    %c0_14 = arith.constant 0 : index
    %66 = memref.load %arg1[%65, %c0_14] : memref<8x5xi32, #tpu.memory_space<smem>>
    %c1_i32_15 = arith.constant 1 : i32
    %67 = arith.addi %0, %c1_i32_15 : i32
    %68 = arith.index_cast %67 : i32 to index
    %c1_16 = arith.constant 1 : index
    %69 = memref.load %arg1[%68, %c1_16] : memref<8x5xi32, #tpu.memory_space<smem>>
    %c1_i32_17 = arith.constant 1 : i32
    %70 = arith.addi %0, %c1_i32_17 : i32
    %71 = arith.index_cast %70 : i32 to index
    %c2_18 = arith.constant 2 : index
    %72 = memref.load %arg1[%71, %c2_18] : memref<8x5xi32, #tpu.memory_space<smem>>
    %c1_i32_19 = arith.constant 1 : i32
    %73 = arith.addi %0, %c1_i32_19 : i32
    %74 = arith.index_cast %73 : i32 to index
    %c3_20 = arith.constant 3 : index
    %75 = memref.load %arg1[%74, %c3_20] : memref<8x5xi32, #tpu.memory_space<smem>>
    %c1_i32_21 = arith.constant 1 : i32
    %76 = arith.addi %0, %c1_i32_21 : i32
    %77 = arith.index_cast %76 : i32 to index
    %c4_22 = arith.constant 4 : index
    %78 = memref.load %arg1[%77, %c4_22] : memref<8x5xi32, #tpu.memory_space<smem>>
    %79 = arith.subi %69, %66 : i32
    %c1_i32_23 = arith.constant 1 : i32
    %80 = arith.maxsi %79, %c1_i32_23 : i32
    %81 = arith.sitofp %80 : i32 to f32
    %cst_24 = arith.constant 1.000000e+00 : f32
    %82 = arith.divf %cst_24, %81 : f32
    %83 = arith.subi %75, %72 : i32
    %c1_i32_25 = arith.constant 1 : i32
    %84 = arith.maxsi %83, %c1_i32_25 : i32
    %85 = arith.sitofp %84 : i32 to f32
    %cst_26 = arith.constant 1.000000e+00 : f32
    %86 = arith.divf %cst_26, %85 : f32
    %c1_i32_27 = arith.constant 1 : i32
    %87 = vector.broadcast %c1_i32_27 : i32 to vector<8x3x16xi32>
    %88 = arith.cmpi eq, %1, %87 : vector<8x3x16xi32>
    %c0_i32_28 = arith.constant 0 : i32
    %89 = vector.broadcast %c0_i32_28 : i32 to vector<8x3x16xi32>
    %90 = arith.cmpi eq, %2, %89 : vector<8x3x16xi32>
    %91 = vector.broadcast %66 : i32 to vector<8x3x16xi32>
    %92 = arith.cmpi sge, %3, %91 : vector<8x3x16xi32>
    %93 = arith.andi %90, %92 : vector<8x3x16xi1>
    %94 = vector.broadcast %69 : i32 to vector<8x3x16xi32>
    %95 = arith.cmpi slt, %3, %94 : vector<8x3x16xi32>
    %96 = arith.andi %93, %95 : vector<8x3x16xi1>
    %c1_i32_29 = arith.constant 1 : i32
    %97 = vector.broadcast %c1_i32_29 : i32 to vector<8x3x16xi32>
    %98 = arith.cmpi eq, %2, %97 : vector<8x3x16xi32>
    %99 = vector.broadcast %72 : i32 to vector<8x3x16xi32>
    %100 = arith.cmpi sge, %3, %99 : vector<8x3x16xi32>
    %101 = arith.andi %98, %100 : vector<8x3x16xi1>
    %102 = vector.broadcast %75 : i32 to vector<8x3x16xi32>
    %103 = arith.cmpi slt, %3, %102 : vector<8x3x16xi32>
    %104 = arith.andi %101, %103 : vector<8x3x16xi1>
    %105 = arith.ori %96, %104 : vector<8x3x16xi1>
    %c2_i32_30 = arith.constant 2 : i32
    %106 = vector.broadcast %c2_i32_30 : i32 to vector<8x3x16xi32>
    %107 = arith.cmpi eq, %2, %106 : vector<8x3x16xi32>
    %108 = vector.broadcast %78 : i32 to vector<8x3x16xi32>
    %109 = arith.cmpi eq, %3, %108 : vector<8x3x16xi32>
    %110 = arith.andi %107, %109 : vector<8x3x16xi1>
    %111 = arith.ori %105, %110 : vector<8x3x16xi1>
    %112 = arith.andi %88, %111 : vector<8x3x16xi1>
    %c0_i32_31 = arith.constant 0 : i32
    %113 = vector.broadcast %c0_i32_31 : i32 to vector<8x3x16xi32>
    %114 = arith.cmpi eq, %2, %113 : vector<8x3x16xi32>
    %c1_i32_32 = arith.constant 1 : i32
    %115 = vector.broadcast %c1_i32_32 : i32 to vector<8x3x16xi32>
    %116 = arith.cmpi eq, %2, %115 : vector<8x3x16xi32>
    %cst_33 = arith.constant 1.000000e+00 : f32
    %117 = vector.broadcast %86 : f32 to vector<8x3x16xf32>
    %118 = vector.broadcast %cst_33 : f32 to vector<8x3x16xf32>
    %119 = arith.select %116, %117, %118 : vector<8x3x16xi1>, vector<8x3x16xf32>
    %120 = vector.broadcast %82 : f32 to vector<8x3x16xf32>
    %121 = arith.select %114, %120, %119 : vector<8x3x16xi1>, vector<8x3x16xf32>
    %122 = arith.select %112, %121, %63 : vector<8x3x16xi1>, vector<8x3x16xf32>
    %c2_i32_34 = arith.constant 2 : i32
    %123 = arith.addi %0, %c2_i32_34 : i32
    %124 = arith.index_cast %123 : i32 to index
    %c0_35 = arith.constant 0 : index
    %125 = memref.load %arg1[%124, %c0_35] : memref<8x5xi32, #tpu.memory_space<smem>>
    %c2_i32_36 = arith.constant 2 : i32
    %126 = arith.addi %0, %c2_i32_36 : i32
    %127 = arith.index_cast %126 : i32 to index
    %c1_37 = arith.constant 1 : index
    %128 = memref.load %arg1[%127, %c1_37] : memref<8x5xi32, #tpu.memory_space<smem>>
    %c2_i32_38 = arith.constant 2 : i32
    %129 = arith.addi %0, %c2_i32_38 : i32
    %130 = arith.index_cast %129 : i32 to index
    %c2_39 = arith.constant 2 : index
    %131 = memref.load %arg1[%130, %c2_39] : memref<8x5xi32, #tpu.memory_space<smem>>
    %c2_i32_40 = arith.constant 2 : i32
    %132 = arith.addi %0, %c2_i32_40 : i32
    %133 = arith.index_cast %132 : i32 to index
    %c3_41 = arith.constant 3 : index
    %134 = memref.load %arg1[%133, %c3_41] : memref<8x5xi32, #tpu.memory_space<smem>>
    %c2_i32_42 = arith.constant 2 : i32
    %135 = arith.addi %0, %c2_i32_42 : i32
    %136 = arith.index_cast %135 : i32 to index
    %c4_43 = arith.constant 4 : index
    %137 = memref.load %arg1[%136, %c4_43] : memref<8x5xi32, #tpu.memory_space<smem>>
    %138 = arith.subi %128, %125 : i32
    %c1_i32_44 = arith.constant 1 : i32
    %139 = arith.maxsi %138, %c1_i32_44 : i32
    %140 = arith.sitofp %139 : i32 to f32
    %cst_45 = arith.constant 1.000000e+00 : f32
    %141 = arith.divf %cst_45, %140 : f32
    %142 = arith.subi %134, %131 : i32
    %c1_i32_46 = arith.constant 1 : i32
    %143 = arith.maxsi %142, %c1_i32_46 : i32
    %144 = arith.sitofp %143 : i32 to f32
    %cst_47 = arith.constant 1.000000e+00 : f32
    %145 = arith.divf %cst_47, %144 : f32
    %c2_i32_48 = arith.constant 2 : i32
    %146 = vector.broadcast %c2_i32_48 : i32 to vector<8x3x16xi32>
    %147 = arith.cmpi eq, %1, %146 : vector<8x3x16xi32>
    %c0_i32_49 = arith.constant 0 : i32
    %148 = vector.broadcast %c0_i32_49 : i32 to vector<8x3x16xi32>
    %149 = arith.cmpi eq, %2, %148 : vector<8x3x16xi32>
    %150 = vector.broadcast %125 : i32 to vector<8x3x16xi32>
    %151 = arith.cmpi sge, %3, %150 : vector<8x3x16xi32>
    %152 = arith.andi %149, %151 : vector<8x3x16xi1>
    %153 = vector.broadcast %128 : i32 to vector<8x3x16xi32>
    %154 = arith.cmpi slt, %3, %153 : vector<8x3x16xi32>
    %155 = arith.andi %152, %154 : vector<8x3x16xi1>
    %c1_i32_50 = arith.constant 1 : i32
    %156 = vector.broadcast %c1_i32_50 : i32 to vector<8x3x16xi32>
    %157 = arith.cmpi eq, %2, %156 : vector<8x3x16xi32>
    %158 = vector.broadcast %131 : i32 to vector<8x3x16xi32>
    %159 = arith.cmpi sge, %3, %158 : vector<8x3x16xi32>
    %160 = arith.andi %157, %159 : vector<8x3x16xi1>
    %161 = vector.broadcast %134 : i32 to vector<8x3x16xi32>
    %162 = arith.cmpi slt, %3, %161 : vector<8x3x16xi32>
    %163 = arith.andi %160, %162 : vector<8x3x16xi1>
    %164 = arith.ori %155, %163 : vector<8x3x16xi1>
    %c2_i32_51 = arith.constant 2 : i32
    %165 = vector.broadcast %c2_i32_51 : i32 to vector<8x3x16xi32>
    %166 = arith.cmpi eq, %2, %165 : vector<8x3x16xi32>
    %167 = vector.broadcast %137 : i32 to vector<8x3x16xi32>
    %168 = arith.cmpi eq, %3, %167 : vector<8x3x16xi32>
    %169 = arith.andi %166, %168 : vector<8x3x16xi1>
    %170 = arith.ori %164, %169 : vector<8x3x16xi1>
    %171 = arith.andi %147, %170 : vector<8x3x16xi1>
    %c0_i32_52 = arith.constant 0 : i32
    %172 = vector.broadcast %c0_i32_52 : i32 to vector<8x3x16xi32>
    %173 = arith.cmpi eq, %2, %172 : vector<8x3x16xi32>
    %c1_i32_53 = arith.constant 1 : i32
    %174 = vector.broadcast %c1_i32_53 : i32 to vector<8x3x16xi32>
    %175 = arith.cmpi eq, %2, %174 : vector<8x3x16xi32>
    %cst_54 = arith.constant 1.000000e+00 : f32
    %176 = vector.broadcast %145 : f32 to vector<8x3x16xf32>
    %177 = vector.broadcast %cst_54 : f32 to vector<8x3x16xf32>
    %178 = arith.select %175, %176, %177 : vector<8x3x16xi1>, vector<8x3x16xf32>
    %179 = vector.broadcast %141 : f32 to vector<8x3x16xf32>
    %180 = arith.select %173, %179, %178 : vector<8x3x16xi1>, vector<8x3x16xf32>
    %181 = arith.select %171, %180, %122 : vector<8x3x16xi1>, vector<8x3x16xf32>
    %c3_i32 = arith.constant 3 : i32
    %182 = arith.addi %0, %c3_i32 : i32
    %183 = arith.index_cast %182 : i32 to index
    %c0_55 = arith.constant 0 : index
    %184 = memref.load %arg1[%183, %c0_55] : memref<8x5xi32, #tpu.memory_space<smem>>
    %c3_i32_56 = arith.constant 3 : i32
    %185 = arith.addi %0, %c3_i32_56 : i32
    %186 = arith.index_cast %185 : i32 to index
    %c1_57 = arith.constant 1 : index
    %187 = memref.load %arg1[%186, %c1_57] : memref<8x5xi32, #tpu.memory_space<smem>>
    %c3_i32_58 = arith.constant 3 : i32
    %188 = arith.addi %0, %c3_i32_58 : i32
    %189 = arith.index_cast %188 : i32 to index
    %c2_59 = arith.constant 2 : index
    %190 = memref.load %arg1[%189, %c2_59] : memref<8x5xi32, #tpu.memory_space<smem>>
    %c3_i32_60 = arith.constant 3 : i32
    %191 = arith.addi %0, %c3_i32_60 : i32
    %192 = arith.index_cast %191 : i32 to index
    %c3_61 = arith.constant 3 : index
    %193 = memref.load %arg1[%192, %c3_61] : memref<8x5xi32, #tpu.memory_space<smem>>
    %c3_i32_62 = arith.constant 3 : i32
    %194 = arith.addi %0, %c3_i32_62 : i32
    %195 = arith.index_cast %194 : i32 to index
    %c4_63 = arith.constant 4 : index
    %196 = memref.load %arg1[%195, %c4_63] : memref<8x5xi32, #tpu.memory_space<smem>>
    %197 = arith.subi %187, %184 : i32
    %c1_i32_64 = arith.constant 1 : i32
    %198 = arith.maxsi %197, %c1_i32_64 : i32
    %199 = arith.sitofp %198 : i32 to f32
    %cst_65 = arith.constant 1.000000e+00 : f32
    %200 = arith.divf %cst_65, %199 : f32
    %201 = arith.subi %193, %190 : i32
    %c1_i32_66 = arith.constant 1 : i32
    %202 = arith.maxsi %201, %c1_i32_66 : i32
    %203 = arith.sitofp %202 : i32 to f32
    %cst_67 = arith.constant 1.000000e+00 : f32
    %204 = arith.divf %cst_67, %203 : f32
    %c3_i32_68 = arith.constant 3 : i32
    %205 = vector.broadcast %c3_i32_68 : i32 to vector<8x3x16xi32>
    %206 = arith.cmpi eq, %1, %205 : vector<8x3x16xi32>
    %c0_i32_69 = arith.constant 0 : i32
    %207 = vector.broadcast %c0_i32_69 : i32 to vector<8x3x16xi32>
    %208 = arith.cmpi eq, %2, %207 : vector<8x3x16xi32>
    %209 = vector.broadcast %184 : i32 to vector<8x3x16xi32>
    %210 = arith.cmpi sge, %3, %209 : vector<8x3x16xi32>
    %211 = arith.andi %208, %210 : vector<8x3x16xi1>
    %212 = vector.broadcast %187 : i32 to vector<8x3x16xi32>
    %213 = arith.cmpi slt, %3, %212 : vector<8x3x16xi32>
    %214 = arith.andi %211, %213 : vector<8x3x16xi1>
    %c1_i32_70 = arith.constant 1 : i32
    %215 = vector.broadcast %c1_i32_70 : i32 to vector<8x3x16xi32>
    %216 = arith.cmpi eq, %2, %215 : vector<8x3x16xi32>
    %217 = vector.broadcast %190 : i32 to vector<8x3x16xi32>
    %218 = arith.cmpi sge, %3, %217 : vector<8x3x16xi32>
    %219 = arith.andi %216, %218 : vector<8x3x16xi1>
    %220 = vector.broadcast %193 : i32 to vector<8x3x16xi32>
    %221 = arith.cmpi slt, %3, %220 : vector<8x3x16xi32>
    %222 = arith.andi %219, %221 : vector<8x3x16xi1>
    %223 = arith.ori %214, %222 : vector<8x3x16xi1>
    %c2_i32_71 = arith.constant 2 : i32
    %224 = vector.broadcast %c2_i32_71 : i32 to vector<8x3x16xi32>
    %225 = arith.cmpi eq, %2, %224 : vector<8x3x16xi32>
    %226 = vector.broadcast %196 : i32 to vector<8x3x16xi32>
    %227 = arith.cmpi eq, %3, %226 : vector<8x3x16xi32>
    %228 = arith.andi %225, %227 : vector<8x3x16xi1>
    %229 = arith.ori %223, %228 : vector<8x3x16xi1>
    %230 = arith.andi %206, %229 : vector<8x3x16xi1>
    %c0_i32_72 = arith.constant 0 : i32
    %231 = vector.broadcast %c0_i32_72 : i32 to vector<8x3x16xi32>
    %232 = arith.cmpi eq, %2, %231 : vector<8x3x16xi32>
    %c1_i32_73 = arith.constant 1 : i32
    %233 = vector.broadcast %c1_i32_73 : i32 to vector<8x3x16xi32>
    %234 = arith.cmpi eq, %2, %233 : vector<8x3x16xi32>
    %cst_74 = arith.constant 1.000000e+00 : f32
    %235 = vector.broadcast %204 : f32 to vector<8x3x16xf32>
    %236 = vector.broadcast %cst_74 : f32 to vector<8x3x16xf32>
    %237 = arith.select %234, %235, %236 : vector<8x3x16xi1>, vector<8x3x16xf32>
    %238 = vector.broadcast %200 : f32 to vector<8x3x16xf32>
    %239 = arith.select %232, %238, %237 : vector<8x3x16xi1>, vector<8x3x16xf32>
    %240 = arith.select %230, %239, %181 : vector<8x3x16xi1>, vector<8x3x16xf32>
    %c4_i32 = arith.constant 4 : i32
    %241 = arith.addi %0, %c4_i32 : i32
    %242 = arith.index_cast %241 : i32 to index
    %c0_75 = arith.constant 0 : index
    %243 = memref.load %arg1[%242, %c0_75] : memref<8x5xi32, #tpu.memory_space<smem>>
    %c4_i32_76 = arith.constant 4 : i32
    %244 = arith.addi %0, %c4_i32_76 : i32
    %245 = arith.index_cast %244 : i32 to index
    %c1_77 = arith.constant 1 : index
    %246 = memref.load %arg1[%245, %c1_77] : memref<8x5xi32, #tpu.memory_space<smem>>
    %c4_i32_78 = arith.constant 4 : i32
    %247 = arith.addi %0, %c4_i32_78 : i32
    %248 = arith.index_cast %247 : i32 to index
    %c2_79 = arith.constant 2 : index
    %249 = memref.load %arg1[%248, %c2_79] : memref<8x5xi32, #tpu.memory_space<smem>>
    %c4_i32_80 = arith.constant 4 : i32
    %250 = arith.addi %0, %c4_i32_80 : i32
    %251 = arith.index_cast %250 : i32 to index
    %c3_81 = arith.constant 3 : index
    %252 = memref.load %arg1[%251, %c3_81] : memref<8x5xi32, #tpu.memory_space<smem>>
    %c4_i32_82 = arith.constant 4 : i32
    %253 = arith.addi %0, %c4_i32_82 : i32
    %254 = arith.index_cast %253 : i32 to index
    %c4_83 = arith.constant 4 : index
    %255 = memref.load %arg1[%254, %c4_83] : memref<8x5xi32, #tpu.memory_space<smem>>
    %256 = arith.subi %246, %243 : i32
    %c1_i32_84 = arith.constant 1 : i32
    %257 = arith.maxsi %256, %c1_i32_84 : i32
    %258 = arith.sitofp %257 : i32 to f32
    %cst_85 = arith.constant 1.000000e+00 : f32
    %259 = arith.divf %cst_85, %258 : f32
    %260 = arith.subi %252, %249 : i32
    %c1_i32_86 = arith.constant 1 : i32
    %261 = arith.maxsi %260, %c1_i32_86 : i32
    %262 = arith.sitofp %261 : i32 to f32
    %cst_87 = arith.constant 1.000000e+00 : f32
    %263 = arith.divf %cst_87, %262 : f32
    %c4_i32_88 = arith.constant 4 : i32
    %264 = vector.broadcast %c4_i32_88 : i32 to vector<8x3x16xi32>
    %265 = arith.cmpi eq, %1, %264 : vector<8x3x16xi32>
    %c0_i32_89 = arith.constant 0 : i32
    %266 = vector.broadcast %c0_i32_89 : i32 to vector<8x3x16xi32>
    %267 = arith.cmpi eq, %2, %266 : vector<8x3x16xi32>
    %268 = vector.broadcast %243 : i32 to vector<8x3x16xi32>
    %269 = arith.cmpi sge, %3, %268 : vector<8x3x16xi32>
    %270 = arith.andi %267, %269 : vector<8x3x16xi1>
    %271 = vector.broadcast %246 : i32 to vector<8x3x16xi32>
    %272 = arith.cmpi slt, %3, %271 : vector<8x3x16xi32>
    %273 = arith.andi %270, %272 : vector<8x3x16xi1>
    %c1_i32_90 = arith.constant 1 : i32
    %274 = vector.broadcast %c1_i32_90 : i32 to vector<8x3x16xi32>
    %275 = arith.cmpi eq, %2, %274 : vector<8x3x16xi32>
    %276 = vector.broadcast %249 : i32 to vector<8x3x16xi32>
    %277 = arith.cmpi sge, %3, %276 : vector<8x3x16xi32>
    %278 = arith.andi %275, %277 : vector<8x3x16xi1>
    %279 = vector.broadcast %252 : i32 to vector<8x3x16xi32>
    %280 = arith.cmpi slt, %3, %279 : vector<8x3x16xi32>
    %281 = arith.andi %278, %280 : vector<8x3x16xi1>
    %282 = arith.ori %273, %281 : vector<8x3x16xi1>
    %c2_i32_91 = arith.constant 2 : i32
    %283 = vector.broadcast %c2_i32_91 : i32 to vector<8x3x16xi32>
    %284 = arith.cmpi eq, %2, %283 : vector<8x3x16xi32>
    %285 = vector.broadcast %255 : i32 to vector<8x3x16xi32>
    %286 = arith.cmpi eq, %3, %285 : vector<8x3x16xi32>
    %287 = arith.andi %284, %286 : vector<8x3x16xi1>
    %288 = arith.ori %282, %287 : vector<8x3x16xi1>
    %289 = arith.andi %265, %288 : vector<8x3x16xi1>
    %c0_i32_92 = arith.constant 0 : i32
    %290 = vector.broadcast %c0_i32_92 : i32 to vector<8x3x16xi32>
    %291 = arith.cmpi eq, %2, %290 : vector<8x3x16xi32>
    %c1_i32_93 = arith.constant 1 : i32
    %292 = vector.broadcast %c1_i32_93 : i32 to vector<8x3x16xi32>
    %293 = arith.cmpi eq, %2, %292 : vector<8x3x16xi32>
    %cst_94 = arith.constant 1.000000e+00 : f32
    %294 = vector.broadcast %263 : f32 to vector<8x3x16xf32>
    %295 = vector.broadcast %cst_94 : f32 to vector<8x3x16xf32>
    %296 = arith.select %293, %294, %295 : vector<8x3x16xi1>, vector<8x3x16xf32>
    %297 = vector.broadcast %259 : f32 to vector<8x3x16xf32>
    %298 = arith.select %291, %297, %296 : vector<8x3x16xi1>, vector<8x3x16xf32>
    %299 = arith.select %289, %298, %240 : vector<8x3x16xi1>, vector<8x3x16xf32>
    %c5_i32 = arith.constant 5 : i32
    %300 = arith.addi %0, %c5_i32 : i32
    %301 = arith.index_cast %300 : i32 to index
    %c0_95 = arith.constant 0 : index
    %302 = memref.load %arg1[%301, %c0_95] : memref<8x5xi32, #tpu.memory_space<smem>>
    %c5_i32_96 = arith.constant 5 : i32
    %303 = arith.addi %0, %c5_i32_96 : i32
    %304 = arith.index_cast %303 : i32 to index
    %c1_97 = arith.constant 1 : index
    %305 = memref.load %arg1[%304, %c1_97] : memref<8x5xi32, #tpu.memory_space<smem>>
    %c5_i32_98 = arith.constant 5 : i32
    %306 = arith.addi %0, %c5_i32_98 : i32
    %307 = arith.index_cast %306 : i32 to index
    %c2_99 = arith.constant 2 : index
    %308 = memref.load %arg1[%307, %c2_99] : memref<8x5xi32, #tpu.memory_space<smem>>
    %c5_i32_100 = arith.constant 5 : i32
    %309 = arith.addi %0, %c5_i32_100 : i32
    %310 = arith.index_cast %309 : i32 to index
    %c3_101 = arith.constant 3 : index
    %311 = memref.load %arg1[%310, %c3_101] : memref<8x5xi32, #tpu.memory_space<smem>>
    %c5_i32_102 = arith.constant 5 : i32
    %312 = arith.addi %0, %c5_i32_102 : i32
    %313 = arith.index_cast %312 : i32 to index
    %c4_103 = arith.constant 4 : index
    %314 = memref.load %arg1[%313, %c4_103] : memref<8x5xi32, #tpu.memory_space<smem>>
    %315 = arith.subi %305, %302 : i32
    %c1_i32_104 = arith.constant 1 : i32
    %316 = arith.maxsi %315, %c1_i32_104 : i32
    %317 = arith.sitofp %316 : i32 to f32
    %cst_105 = arith.constant 1.000000e+00 : f32
    %318 = arith.divf %cst_105, %317 : f32
    %319 = arith.subi %311, %308 : i32
    %c1_i32_106 = arith.constant 1 : i32
    %320 = arith.maxsi %319, %c1_i32_106 : i32
    %321 = arith.sitofp %320 : i32 to f32
    %cst_107 = arith.constant 1.000000e+00 : f32
    %322 = arith.divf %cst_107, %321 : f32
    %c5_i32_108 = arith.constant 5 : i32
    %323 = vector.broadcast %c5_i32_108 : i32 to vector<8x3x16xi32>
    %324 = arith.cmpi eq, %1, %323 : vector<8x3x16xi32>
    %c0_i32_109 = arith.constant 0 : i32
    %325 = vector.broadcast %c0_i32_109 : i32 to vector<8x3x16xi32>
    %326 = arith.cmpi eq, %2, %325 : vector<8x3x16xi32>
    %327 = vector.broadcast %302 : i32 to vector<8x3x16xi32>
    %328 = arith.cmpi sge, %3, %327 : vector<8x3x16xi32>
    %329 = arith.andi %326, %328 : vector<8x3x16xi1>
    %330 = vector.broadcast %305 : i32 to vector<8x3x16xi32>
    %331 = arith.cmpi slt, %3, %330 : vector<8x3x16xi32>
    %332 = arith.andi %329, %331 : vector<8x3x16xi1>
    %c1_i32_110 = arith.constant 1 : i32
    %333 = vector.broadcast %c1_i32_110 : i32 to vector<8x3x16xi32>
    %334 = arith.cmpi eq, %2, %333 : vector<8x3x16xi32>
    %335 = vector.broadcast %308 : i32 to vector<8x3x16xi32>
    %336 = arith.cmpi sge, %3, %335 : vector<8x3x16xi32>
    %337 = arith.andi %334, %336 : vector<8x3x16xi1>
    %338 = vector.broadcast %311 : i32 to vector<8x3x16xi32>
    %339 = arith.cmpi slt, %3, %338 : vector<8x3x16xi32>
    %340 = arith.andi %337, %339 : vector<8x3x16xi1>
    %341 = arith.ori %332, %340 : vector<8x3x16xi1>
    %c2_i32_111 = arith.constant 2 : i32
    %342 = vector.broadcast %c2_i32_111 : i32 to vector<8x3x16xi32>
    %343 = arith.cmpi eq, %2, %342 : vector<8x3x16xi32>
    %344 = vector.broadcast %314 : i32 to vector<8x3x16xi32>
    %345 = arith.cmpi eq, %3, %344 : vector<8x3x16xi32>
    %346 = arith.andi %343, %345 : vector<8x3x16xi1>
    %347 = arith.ori %341, %346 : vector<8x3x16xi1>
    %348 = arith.andi %324, %347 : vector<8x3x16xi1>
    %c0_i32_112 = arith.constant 0 : i32
    %349 = vector.broadcast %c0_i32_112 : i32 to vector<8x3x16xi32>
    %350 = arith.cmpi eq, %2, %349 : vector<8x3x16xi32>
    %c1_i32_113 = arith.constant 1 : i32
    %351 = vector.broadcast %c1_i32_113 : i32 to vector<8x3x16xi32>
    %352 = arith.cmpi eq, %2, %351 : vector<8x3x16xi32>
    %cst_114 = arith.constant 1.000000e+00 : f32
    %353 = vector.broadcast %322 : f32 to vector<8x3x16xf32>
    %354 = vector.broadcast %cst_114 : f32 to vector<8x3x16xf32>
    %355 = arith.select %352, %353, %354 : vector<8x3x16xi1>, vector<8x3x16xf32>
    %356 = vector.broadcast %318 : f32 to vector<8x3x16xf32>
    %357 = arith.select %350, %356, %355 : vector<8x3x16xi1>, vector<8x3x16xf32>
    %358 = arith.select %348, %357, %299 : vector<8x3x16xi1>, vector<8x3x16xf32>
    %c6_i32 = arith.constant 6 : i32
    %359 = arith.addi %0, %c6_i32 : i32
    %360 = arith.index_cast %359 : i32 to index
    %c0_115 = arith.constant 0 : index
    %361 = memref.load %arg1[%360, %c0_115] : memref<8x5xi32, #tpu.memory_space<smem>>
    %c6_i32_116 = arith.constant 6 : i32
    %362 = arith.addi %0, %c6_i32_116 : i32
    %363 = arith.index_cast %362 : i32 to index
    %c1_117 = arith.constant 1 : index
    %364 = memref.load %arg1[%363, %c1_117] : memref<8x5xi32, #tpu.memory_space<smem>>
    %c6_i32_118 = arith.constant 6 : i32
    %365 = arith.addi %0, %c6_i32_118 : i32
    %366 = arith.index_cast %365 : i32 to index
    %c2_119 = arith.constant 2 : index
    %367 = memref.load %arg1[%366, %c2_119] : memref<8x5xi32, #tpu.memory_space<smem>>
    %c6_i32_120 = arith.constant 6 : i32
    %368 = arith.addi %0, %c6_i32_120 : i32
    %369 = arith.index_cast %368 : i32 to index
    %c3_121 = arith.constant 3 : index
    %370 = memref.load %arg1[%369, %c3_121] : memref<8x5xi32, #tpu.memory_space<smem>>
    %c6_i32_122 = arith.constant 6 : i32
    %371 = arith.addi %0, %c6_i32_122 : i32
    %372 = arith.index_cast %371 : i32 to index
    %c4_123 = arith.constant 4 : index
    %373 = memref.load %arg1[%372, %c4_123] : memref<8x5xi32, #tpu.memory_space<smem>>
    %374 = arith.subi %364, %361 : i32
    %c1_i32_124 = arith.constant 1 : i32
    %375 = arith.maxsi %374, %c1_i32_124 : i32
    %376 = arith.sitofp %375 : i32 to f32
    %cst_125 = arith.constant 1.000000e+00 : f32
    %377 = arith.divf %cst_125, %376 : f32
    %378 = arith.subi %370, %367 : i32
    %c1_i32_126 = arith.constant 1 : i32
    %379 = arith.maxsi %378, %c1_i32_126 : i32
    %380 = arith.sitofp %379 : i32 to f32
    %cst_127 = arith.constant 1.000000e+00 : f32
    %381 = arith.divf %cst_127, %380 : f32
    %c6_i32_128 = arith.constant 6 : i32
    %382 = vector.broadcast %c6_i32_128 : i32 to vector<8x3x16xi32>
    %383 = arith.cmpi eq, %1, %382 : vector<8x3x16xi32>
    %c0_i32_129 = arith.constant 0 : i32
    %384 = vector.broadcast %c0_i32_129 : i32 to vector<8x3x16xi32>
    %385 = arith.cmpi eq, %2, %384 : vector<8x3x16xi32>
    %386 = vector.broadcast %361 : i32 to vector<8x3x16xi32>
    %387 = arith.cmpi sge, %3, %386 : vector<8x3x16xi32>
    %388 = arith.andi %385, %387 : vector<8x3x16xi1>
    %389 = vector.broadcast %364 : i32 to vector<8x3x16xi32>
    %390 = arith.cmpi slt, %3, %389 : vector<8x3x16xi32>
    %391 = arith.andi %388, %390 : vector<8x3x16xi1>
    %c1_i32_130 = arith.constant 1 : i32
    %392 = vector.broadcast %c1_i32_130 : i32 to vector<8x3x16xi32>
    %393 = arith.cmpi eq, %2, %392 : vector<8x3x16xi32>
    %394 = vector.broadcast %367 : i32 to vector<8x3x16xi32>
    %395 = arith.cmpi sge, %3, %394 : vector<8x3x16xi32>
    %396 = arith.andi %393, %395 : vector<8x3x16xi1>
    %397 = vector.broadcast %370 : i32 to vector<8x3x16xi32>
    %398 = arith.cmpi slt, %3, %397 : vector<8x3x16xi32>
    %399 = arith.andi %396, %398 : vector<8x3x16xi1>
    %400 = arith.ori %391, %399 : vector<8x3x16xi1>
    %c2_i32_131 = arith.constant 2 : i32
    %401 = vector.broadcast %c2_i32_131 : i32 to vector<8x3x16xi32>
    %402 = arith.cmpi eq, %2, %401 : vector<8x3x16xi32>
    %403 = vector.broadcast %373 : i32 to vector<8x3x16xi32>
    %404 = arith.cmpi eq, %3, %403 : vector<8x3x16xi32>
    %405 = arith.andi %402, %404 : vector<8x3x16xi1>
    %406 = arith.ori %400, %405 : vector<8x3x16xi1>
    %407 = arith.andi %383, %406 : vector<8x3x16xi1>
    %c0_i32_132 = arith.constant 0 : i32
    %408 = vector.broadcast %c0_i32_132 : i32 to vector<8x3x16xi32>
    %409 = arith.cmpi eq, %2, %408 : vector<8x3x16xi32>
    %c1_i32_133 = arith.constant 1 : i32
    %410 = vector.broadcast %c1_i32_133 : i32 to vector<8x3x16xi32>
    %411 = arith.cmpi eq, %2, %410 : vector<8x3x16xi32>
    %cst_134 = arith.constant 1.000000e+00 : f32
    %412 = vector.broadcast %381 : f32 to vector<8x3x16xf32>
    %413 = vector.broadcast %cst_134 : f32 to vector<8x3x16xf32>
    %414 = arith.select %411, %412, %413 : vector<8x3x16xi1>, vector<8x3x16xf32>
    %415 = vector.broadcast %377 : f32 to vector<8x3x16xf32>
    %416 = arith.select %409, %415, %414 : vector<8x3x16xi1>, vector<8x3x16xf32>
    %417 = arith.select %407, %416, %358 : vector<8x3x16xi1>, vector<8x3x16xf32>
    %c7_i32 = arith.constant 7 : i32
    %418 = arith.addi %0, %c7_i32 : i32
    %419 = arith.index_cast %418 : i32 to index
    %c0_135 = arith.constant 0 : index
    %420 = memref.load %arg1[%419, %c0_135] : memref<8x5xi32, #tpu.memory_space<smem>>
    %c7_i32_136 = arith.constant 7 : i32
    %421 = arith.addi %0, %c7_i32_136 : i32
    %422 = arith.index_cast %421 : i32 to index
    %c1_137 = arith.constant 1 : index
    %423 = memref.load %arg1[%422, %c1_137] : memref<8x5xi32, #tpu.memory_space<smem>>
    %c7_i32_138 = arith.constant 7 : i32
    %424 = arith.addi %0, %c7_i32_138 : i32
    %425 = arith.index_cast %424 : i32 to index
    %c2_139 = arith.constant 2 : index
    %426 = memref.load %arg1[%425, %c2_139] : memref<8x5xi32, #tpu.memory_space<smem>>
    %c7_i32_140 = arith.constant 7 : i32
    %427 = arith.addi %0, %c7_i32_140 : i32
    %428 = arith.index_cast %427 : i32 to index
    %c3_141 = arith.constant 3 : index
    %429 = memref.load %arg1[%428, %c3_141] : memref<8x5xi32, #tpu.memory_space<smem>>
    %c7_i32_142 = arith.constant 7 : i32
    %430 = arith.addi %0, %c7_i32_142 : i32
    %431 = arith.index_cast %430 : i32 to index
    %c4_143 = arith.constant 4 : index
    %432 = memref.load %arg1[%431, %c4_143] : memref<8x5xi32, #tpu.memory_space<smem>>
    %433 = arith.subi %423, %420 : i32
    %c1_i32_144 = arith.constant 1 : i32
    %434 = arith.maxsi %433, %c1_i32_144 : i32
    %435 = arith.sitofp %434 : i32 to f32
    %cst_145 = arith.constant 1.000000e+00 : f32
    %436 = arith.divf %cst_145, %435 : f32
    %437 = arith.subi %429, %426 : i32
    %c1_i32_146 = arith.constant 1 : i32
    %438 = arith.maxsi %437, %c1_i32_146 : i32
    %439 = arith.sitofp %438 : i32 to f32
    %cst_147 = arith.constant 1.000000e+00 : f32
    %440 = arith.divf %cst_147, %439 : f32
    %c7_i32_148 = arith.constant 7 : i32
    %441 = vector.broadcast %c7_i32_148 : i32 to vector<8x3x16xi32>
    %442 = arith.cmpi eq, %1, %441 : vector<8x3x16xi32>
    %c0_i32_149 = arith.constant 0 : i32
    %443 = vector.broadcast %c0_i32_149 : i32 to vector<8x3x16xi32>
    %444 = arith.cmpi eq, %2, %443 : vector<8x3x16xi32>
    %445 = vector.broadcast %420 : i32 to vector<8x3x16xi32>
    %446 = arith.cmpi sge, %3, %445 : vector<8x3x16xi32>
    %447 = arith.andi %444, %446 : vector<8x3x16xi1>
    %448 = vector.broadcast %423 : i32 to vector<8x3x16xi32>
    %449 = arith.cmpi slt, %3, %448 : vector<8x3x16xi32>
    %450 = arith.andi %447, %449 : vector<8x3x16xi1>
    %c1_i32_150 = arith.constant 1 : i32
    %451 = vector.broadcast %c1_i32_150 : i32 to vector<8x3x16xi32>
    %452 = arith.cmpi eq, %2, %451 : vector<8x3x16xi32>
    %453 = vector.broadcast %426 : i32 to vector<8x3x16xi32>
    %454 = arith.cmpi sge, %3, %453 : vector<8x3x16xi32>
    %455 = arith.andi %452, %454 : vector<8x3x16xi1>
    %456 = vector.broadcast %429 : i32 to vector<8x3x16xi32>
    %457 = arith.cmpi slt, %3, %456 : vector<8x3x16xi32>
    %458 = arith.andi %455, %457 : vector<8x3x16xi1>
    %459 = arith.ori %450, %458 : vector<8x3x16xi1>
    %c2_i32_151 = arith.constant 2 : i32
    %460 = vector.broadcast %c2_i32_151 : i32 to vector<8x3x16xi32>
    %461 = arith.cmpi eq, %2, %460 : vector<8x3x16xi32>
    %462 = vector.broadcast %432 : i32 to vector<8x3x16xi32>
    %463 = arith.cmpi eq, %3, %462 : vector<8x3x16xi32>
    %464 = arith.andi %461, %463 : vector<8x3x16xi1>
    %465 = arith.ori %459, %464 : vector<8x3x16xi1>
    %466 = arith.andi %442, %465 : vector<8x3x16xi1>
    %c0_i32_152 = arith.constant 0 : i32
    %467 = vector.broadcast %c0_i32_152 : i32 to vector<8x3x16xi32>
    %468 = arith.cmpi eq, %2, %467 : vector<8x3x16xi32>
    %c1_i32_153 = arith.constant 1 : i32
    %469 = vector.broadcast %c1_i32_153 : i32 to vector<8x3x16xi32>
    %470 = arith.cmpi eq, %2, %469 : vector<8x3x16xi32>
    %cst_154 = arith.constant 1.000000e+00 : f32
    %471 = vector.broadcast %440 : f32 to vector<8x3x16xf32>
    %472 = vector.broadcast %cst_154 : f32 to vector<8x3x16xf32>
    %473 = arith.select %470, %471, %472 : vector<8x3x16xi1>, vector<8x3x16xf32>
    %474 = vector.broadcast %436 : f32 to vector<8x3x16xf32>
    %475 = arith.select %468, %474, %473 : vector<8x3x16xi1>, vector<8x3x16xf32>
    %476 = arith.select %466, %475, %417 : vector<8x3x16xi1>, vector<8x3x16xf32>
    %c0_155 = arith.constant 0 : index
    %c0_156 = arith.constant 0 : index
    %c0_157 = arith.constant 0 : index
    %477 = vector.load %arg2[%c0_155, %c0_156, %c0_157] : memref<8x16x32xf32, #tpu.memory_space<vmem>>, vector<8x16x32xf32>
    %cst_158 = arith.constant dense<0.000000e+00> : vector<8x3x32xf32>
    %478 = tpu.matmul %476, %477, %cst_158 {dimension_numbers = #tpu.dot_dimension_numbers<[2], [1], [1], [2], [0, 0, 0, 1, 1, 2], [0], [0]>} : vector<8x3x16xf32>, vector<8x16x32xf32>, vector<8x3x32xf32> -> vector<8x3x32xf32>
    %479 = vector.extract_strided_slice %478 {offsets = [0, 0, 0], sizes = [8, 1, 32], strides = [1, 1, 1]} : vector<8x3x32xf32> to vector<8x1x32xf32>
    %480 = vector.shape_cast %479 : vector<8x1x32xf32> to vector<8x32xf32>
    %481 = vector.extract_strided_slice %478 {offsets = [0, 1, 0], sizes = [8, 1, 32], strides = [1, 1, 1]} : vector<8x3x32xf32> to vector<8x1x32xf32>
    %482 = vector.shape_cast %481 : vector<8x1x32xf32> to vector<8x32xf32>
    %483 = vector.extract_strided_slice %478 {offsets = [0, 2, 0], sizes = [8, 1, 32], strides = [1, 1, 1]} : vector<8x3x32xf32> to vector<8x1x32xf32>
    %484 = vector.shape_cast %483 : vector<8x1x32xf32> to vector<8x32xf32>
    %c0_159 = arith.constant 0 : index
    %c0_160 = arith.constant 0 : index
    %485 = vector.load %arg3[%c0_159, %c0_160] : memref<32x64xf32, #tpu.memory_space<vmem>>, vector<32x64xf32>
    %cst_161 = arith.constant dense<0.000000e+00> : vector<8x64xf32>
    %486 = tpu.matmul %480, %485, %cst_161 {dimension_numbers = #tpu.dot_dimension_numbers<[1], [0], [0], [1], [0, 0, 1, 1], [], []>} : vector<8x32xf32>, vector<32x64xf32>, vector<8x64xf32> -> vector<8x64xf32>
    %c0_162 = arith.constant 0 : index
    %c0_163 = arith.constant 0 : index
    %487 = vector.load %arg4[%c0_162, %c0_163] : memref<32x64xf32, #tpu.memory_space<vmem>>, vector<32x64xf32>
    %cst_164 = arith.constant dense<0.000000e+00> : vector<8x64xf32>
    %488 = tpu.matmul %482, %487, %cst_164 {dimension_numbers = #tpu.dot_dimension_numbers<[1], [0], [0], [1], [0, 0, 1, 1], [], []>} : vector<8x32xf32>, vector<32x64xf32>, vector<8x64xf32> -> vector<8x64xf32>
    %489 = arith.addf %486, %488 : vector<8x64xf32>
    %c0_165 = arith.constant 0 : index
    %c0_166 = arith.constant 0 : index
    %490 = vector.load %arg5[%c0_165, %c0_166] : memref<32x64xf32, #tpu.memory_space<vmem>>, vector<32x64xf32>
    %cst_167 = arith.constant dense<0.000000e+00> : vector<8x64xf32>
    %491 = tpu.matmul %484, %490, %cst_167 {dimension_numbers = #tpu.dot_dimension_numbers<[1], [0], [0], [1], [0, 0, 1, 1], [], []>} : vector<8x32xf32>, vector<32x64xf32>, vector<8x64xf32> -> vector<8x64xf32>
    %492 = arith.addf %489, %491 : vector<8x64xf32>
    %c0_168 = arith.constant 0 : index
    %c0_169 = arith.constant 0 : index
    %493 = vector.load %arg6[%c0_168, %c0_169] : memref<1x64xf32, #tpu.memory_space<vmem>>, vector<1x64xf32>
    %494 = vector.broadcast %493 : vector<1x64xf32> to vector<8x64xf32>
    %495 = arith.addf %492, %494 : vector<8x64xf32>
    %cst_170 = arith.constant 0.000000e+00 : f32
    %496 = vector.broadcast %cst_170 : f32 to vector<8x64xf32>
    %497 = arith.cmpf ogt, %495, %496 : vector<8x64xf32>
    %cst_171 = arith.constant 0.00999999977 : f32
    %498 = vector.broadcast %cst_171 : f32 to vector<8x64xf32>
    %499 = arith.mulf %498, %495 : vector<8x64xf32>
    %500 = arith.select %497, %495, %499 : vector<8x64xi1>, vector<8x64xf32>
    %c0_172 = arith.constant 0 : index
    %c0_173 = arith.constant 0 : index
    %501 = vector.load %arg7[%c0_172, %c0_173] : memref<64x128xf32, #tpu.memory_space<vmem>>, vector<64x128xf32>
    %cst_174 = arith.constant dense<0.000000e+00> : vector<8x128xf32>
    %502 = tpu.matmul %500, %501, %cst_174 {dimension_numbers = #tpu.dot_dimension_numbers<[1], [0], [0], [1], [0, 0, 1, 1], [], []>} : vector<8x64xf32>, vector<64x128xf32>, vector<8x128xf32> -> vector<8x128xf32>
    %c0_175 = arith.constant 0 : index
    %c0_176 = arith.constant 0 : index
    %503 = vector.load %arg8[%c0_175, %c0_176] : memref<1x128xf32, #tpu.memory_space<vmem>>, vector<1x128xf32>
    %504 = vector.broadcast %503 : vector<1x128xf32> to vector<8x128xf32>
    %505 = arith.addf %502, %504 : vector<8x128xf32>
    %c0_177 = arith.constant 0 : index
    %c0_178 = arith.constant 0 : index
    %506 = vector.load %arg9[%c0_177, %c0_178] : memref<8x128xf32, #tpu.memory_space<vmem>>, vector<8x128xf32>
    tpu.vector_store %arg9[%c0_177, %c0_178], %505 {strides = array<i32>} : memref<8x128xf32, #tpu.memory_space<vmem>>, vector<8x128xf32>,
    return
  }
  func.func @transform_0(%arg0: i32, %arg1: memref<8x5xi32, #tpu.memory_space<smem>>) -> (i32, i32, i32) {
    %c0_i32 = arith.constant 0 : i32
    %c0_i32_0 = arith.constant 0 : i32
    %c0_i32_1 = arith.constant 0 : i32
    return %arg0, %c0_i32, %c0_i32_0 : i32, i32, i32
  }
  func.func @transform_1(%arg0: i32, %arg1: memref<8x5xi32, #tpu.memory_space<smem>>) -> (i32, i32) {
    %c0_i32 = arith.constant 0 : i32
    %c0_i32_0 = arith.constant 0 : i32
    %c0_i32_1 = arith.constant 0 : i32
    return %c0_i32, %c0_i32_0 : i32, i32
  }
  func.func @transform_2(%arg0: i32, %arg1: memref<8x5xi32, #tpu.memory_space<smem>>) -> (i32, i32) {
    %c0_i32 = arith.constant 0 : i32
    %c0_i32_0 = arith.constant 0 : i32
    %c0_i32_1 = arith.constant 0 : i32
    return %c0_i32, %c0_i32_0 : i32, i32
  }
  func.func @transform_3(%arg0: i32, %arg1: memref<8x5xi32, #tpu.memory_space<smem>>) -> (i32, i32) {
    %c0_i32 = arith.constant 0 : i32
    %c0_i32_0 = arith.constant 0 : i32
    %c0_i32_1 = arith.constant 0 : i32
    return %c0_i32, %c0_i32_0 : i32, i32
  }
  func.func @transform_4(%arg0: i32, %arg1: memref<8x5xi32, #tpu.memory_space<smem>>) -> (i32, i32) {
    %c0_i32 = arith.constant 0 : i32
    %c0_i32_0 = arith.constant 0 : i32
    %c0_i32_1 = arith.constant 0 : i32
    return %c0_i32, %c0_i32_0 : i32, i32
  }
  func.func @transform_5(%arg0: i32, %arg1: memref<8x5xi32, #tpu.memory_space<smem>>) -> (i32, i32) {
    %c0_i32 = arith.constant 0 : i32
    %c0_i32_0 = arith.constant 0 : i32
    %c0_i32_1 = arith.constant 0 : i32
    return %c0_i32, %c0_i32_0 : i32, i32
  }
  func.func @transform_6(%arg0: i32, %arg1: memref<8x5xi32, #tpu.memory_space<smem>>) -> (i32, i32) {
    %c0_i32 = arith.constant 0 : i32
    %c0_i32_0 = arith.constant 0 : i32
    %c0_i32_1 = arith.constant 0 : i32
    return %c0_i32, %c0_i32_0 : i32, i32
  }
  func.func @transform_7(%arg0: i32, %arg1: memref<8x5xi32, #tpu.memory_space<smem>>) -> (i32, i32) {
    %c0_i32 = arith.constant 0 : i32
    %c0_i32_0 = arith.constant 0 : i32
    return %arg0, %c0_i32 : i32, i32
  }
}

</mosaic_0001>

<llo_original>
// kernel: tpu_custom_call.1
$region0: #{tpu_custom_call.1}
  #allocation0 [shape = 'u32[]', space=smem, size = 0x4, offset = 0x4, fixed_abs, tag = 'smem constant byte address 0x4 - core index']
  #allocation1 [shape = 'u32[144,128]{1,0:T(1,128)}', space=vmem, size = 0x12000, scoped, tag = 'internal scratch']
  #allocation2 [shape = 's32[1]{0}', space=sflag, size = 0x4, scoped, tag = 'scoped memory for tpu_custom_call.1']
  #allocation3 [shape = 'u8[4096]{0}', space=smem, size = 0x1000, scoped, tag = 'prefetched SMEM operand 0']
  %s0 = inlined_call_operand.hbm [shape: s32[8,5], index: 0, kind: input, shape index: {}]
  %s1 = inlined_call_operand.hbm [shape: f32[8,16,32], index: 1, kind: input, shape index: {}]
  %s2 = inlined_call_operand.hbm [shape: f32[32,64], index: 2, kind: input, shape index: {}]
  %s3 = inlined_call_operand.hbm [shape: f32[32,64], index: 3, kind: input, shape index: {}]
  %s4 = inlined_call_operand.hbm [shape: f32[32,64], index: 4, kind: input, shape index: {}]
  %s5 = inlined_call_operand.vmem [shape: f32[1,64], index: 5, kind: input, shape index: {}]
  %s6 = inlined_call_operand.hbm [shape: f32[64,128], index: 6, kind: input, shape index: {}]
  %s7 = inlined_call_operand.vmem [shape: f32[1,128], index: 7, kind: input, shape index: {}]
  %s8 = inlined_call_operand.hbm [shape: f32[8,128], index: 8, kind: output, shape index: {}]
  %s9 = sld [smem:[#allocation0]]
  $region58: #{tpu_custom_call.1} parent=0
    _
  %s11 = ssub.s32 1, %s9
  %s12 = scalar_select 0, %s11, %s9
  %14 = dma.hbm_to_smem %s0, 128, [#allocation3], [#allocation2]
  %15 = dma.done [#allocation2], 128
  %16 = sfence
  $region1: #{tpu_custom_call.1} parent=0
    #allocation4 [shape = 'u8[65536]{0}', space=vmem, size = 0x10000, scoped, tag = 'input window, operand 1, single buffered']
    #allocation5 [shape = 's32[1]{0}', space=sflag, size = 0x4, scoped, tag = 'scoped memory for tpu_custom_call.1']
    #allocation6 [shape = 's32[1]{0}', space=sflag, size = 0x4, scoped, tag = 'scoped memory for tpu_custom_call.1']
    #allocation7 [shape = 'u8[16384]{0}', space=vmem, size = 0x4000, scoped, tag = 'input window, operand 2, single buffered']
    #allocation8 [shape = 's32[1]{0}', space=sflag, size = 0x4, scoped, tag = 'scoped memory for tpu_custom_call.1']
    #allocation9 [shape = 'u8[16384]{0}', space=vmem, size = 0x4000, scoped, tag = 'input window, operand 3, single buffered']
    #allocation10 [shape = 'u8[16384]{0}', space=vmem, size = 0x4000, scoped, tag = 'input window, operand 4, single buffered']
    #allocation11 [shape = 's32[1]{0}', space=sflag, size = 0x4, scoped, tag = 'scoped memory for tpu_custom_call.1']
    #allocation12 [shape = 'u8[32768]{0}', space=vmem, size = 0x8000, scoped, tag = 'input window, operand 6, single buffered']
    #allocation13 [shape = 'u8[4096]{0}', space=vmem, size = 0x1000, scoped, tag = 'output window, operand 0, single buffered']
    %17 = vsyncpa [#allocation5], 0
    %18 = vsyncpa [#allocation8], 0
    %19 = vsyncpa [#allocation11], 0
    %20 = vsyncpa [#allocation6], 0
    // Predicated region
    $region2: #{tpu_custom_call.1} parent=1 // pred_check
      _
    $region3: #{tpu_custom_call.1} parent=1 // pred_check_branch
      %22 = sbr.rel (0) target = $region5
    $region4: #{tpu_custom_call.1} parent=1 // pred_region
      %s24 = ssub.s32 2048, 2048
      %25 = vsyncadd [#allocation5], %s24
      %s26 = sshll.u32 [#allocation4], 4
      %s27 = int_to_ptr.vmem [resolvable:$true] %s26
      %32 = dma.hbm_to_vmem [thread:$0]  %s1, 2048, %s27, [#allocation5], 128, 128, 8
    $region5: #{tpu_custom_call.1} parent=1 // pred_fallthru
      _
    // Predicated region
    $region6: #{tpu_custom_call.1} parent=1 // pred_check
      _
    $region7: #{tpu_custom_call.1} parent=1 // pred_check_branch
      %34 = sbr.rel (0) target = $region9
    $region8: #{tpu_custom_call.1} parent=1 // pred_region
      %s36 = ssub.s32 512, 512
      %37 = vsyncadd [#allocation8], %s36
      %s38 = sshll.u32 [#allocation7], 4
      %s39 = int_to_ptr.vmem [resolvable:$true] %s38
      %44 = dma.hbm_to_vmem [thread:$0]  %s2, 512, %s39, [#allocation8], 128, 128, 8
    $region9: #{tpu_custom_call.1} parent=1 // pred_fallthru
      _
    // Predicated region
    $region10: #{tpu_custom_call.1} parent=1 // pred_check
      _
    $region11: #{tpu_custom_call.1} parent=1 // pred_check_branch
      %46 = sbr.rel (0) target = $region13
    $region12: #{tpu_custom_call.1} parent=1 // pred_region
      %s48 = ssub.s32 512, 512
      %49 = vsyncadd [#allocation8], %s48
      %s50 = sshll.u32 [#allocation9], 4
      %s51 = int_to_ptr.vmem [resolvable:$true] %s50
      %56 = dma.hbm_to_vmem [thread:$0]  %s3, 512, %s51, [#allocation8], 128, 128, 8
    $region13: #{tpu_custom_call.1} parent=1 // pred_fallthru
      _
    // Predicated region
    $region14: #{tpu_custom_call.1} parent=1 // pred_check
      _
    $region15: #{tpu_custom_call.1} parent=1 // pred_check_branch
      %58 = sbr.rel (0) target = $region17
    $region16: #{tpu_custom_call.1} parent=1 // pred_region
      %s60 = ssub.s32 512, 512
      %61 = vsyncadd [#allocation11], %s60
      %s62 = sshll.u32 [#allocation10], 4
      %s63 = int_to_ptr.vmem [resolvable:$true] %s62
      %68 = dma.hbm_to_vmem [thread:$0]  %s4, 512, %s63, [#allocation11], 128, 128, 8
    $region17: #{tpu_custom_call.1} parent=1 // pred_fallthru
      _
    // Predicated region
    $region18: #{tpu_custom_call.1} parent=1 // pred_check
      _
    $region19: #{tpu_custom_call.1} parent=1 // pred_check_branch
      %70 = sbr.rel (0) target = $region21
    $region20: #{tpu_custom_call.1} parent=1 // pred_region
      _
    $region21: #{tpu_custom_call.1} parent=1 // pred_fallthru
      _
    // Predicated region
    $region22: #{tpu_custom_call.1} parent=1 // pred_check
      _
    $region23: #{tpu_custom_call.1} parent=1 // pred_check_branch
      %72 = sbr.rel (0) target = $region25
    $region24: #{tpu_custom_call.1} parent=1 // pred_region
      %s74 = ssub.s32 1024, 1024
      %75 = vsyncadd [#allocation11], %s74
      %s76 = sshll.u32 [#allocation12], 4
      %s77 = int_to_ptr.vmem [resolvable:$true] %s76
      %82 = dma.hbm_to_vmem [thread:$0]  %s6, 1024, %s77, [#allocation11], 128, 128, 8
    $region25: #{tpu_custom_call.1} parent=1 // pred_fallthru
      _
    // Predicated region
    $region26: #{tpu_custom_call.1} parent=1 // pred_check
      _
    $region27: #{tpu_custom_call.1} parent=1 // pred_check_branch
      %84 = sbr.rel (0) target = $region29
    $region28: #{tpu_custom_call.1} parent=1 // pred_region
      _
    $region29: #{tpu_custom_call.1} parent=1 // pred_fallthru
      _
    // Predicated region
    $region30: #{tpu_custom_call.1} parent=1 // pred_check
      _
    $region31: #{tpu_custom_call.1} parent=1 // pred_check_branch
      %86 = sbr.rel (0) target = $region33
    $region32: #{tpu_custom_call.1} parent=1 // pred_region
      %87 = dma.done [#allocation5], 2048
    $region33: #{tpu_custom_call.1} parent=1 // pred_fallthru
      _
    // Predicated region
    $region34: #{tpu_custom_call.1} parent=1 // pred_check
      _
    $region35: #{tpu_custom_call.1} parent=1 // pred_check_branch
      %89 = sbr.rel (0) target = $region37
    $region36: #{tpu_custom_call.1} parent=1 // pred_region
      %90 = dma.done [#allocation8], 512
    $region37: #{tpu_custom_call.1} parent=1 // pred_fallthru
      _
    // Predicated region
    $region38: #{tpu_custom_call.1} parent=1 // pred_check
      _
    $region39: #{tpu_custom_call.1} parent=1 // pred_check_branch
      %92 = sbr.rel (0) target = $region41
    $region40: #{tpu_custom_call.1} parent=1 // pred_region
      %93 = dma.done [#allocation8], 512
    $region41: #{tpu_custom_call.1} parent=1 // pred_fallthru
      _
    // Predicated region
    $region42: #{tpu_custom_call.1} parent=1 // pred_check
      _
    $region43: #{tpu_custom_call.1} parent=1 // pred_check_branch
      %95 = sbr.rel (0) target = $region45
    $region44: #{tpu_custom_call.1} parent=1 // pred_region
      %96 = dma.done [#allocation11], 512
    $region45: #{tpu_custom_call.1} parent=1 // pred_fallthru
      _
    // Predicated region
    $region46: #{tpu_custom_call.1} parent=1 // pred_check
      _
    $region47: #{tpu_custom_call.1} parent=1 // pred_check_branch
      %98 = sbr.rel (0) target = $region49
    $region48: #{tpu_custom_call.1} parent=1 // pred_region
      %99 = dma.done [#allocation11], 1024
    $region49: #{tpu_custom_call.1} parent=1 // pred_fallthru
      _
    %s100 = smul.u32 0, 8
    %v101 = vlaneseq
    %v102 = vshrl.u32 %v101, 7
    %v103 = vlaneseq
    %v104 = vand.u32 %v103, 127
    %s105 = smul.u32 %s100, 128
    %s106 = sld [smem:[#allocation3 + %s105]]
    %s107 = sadd.s32 %s105, 1
    %s108 = sld [smem:[#allocation3 + %s107]]
    %s109 = sadd.s32 %s105, 2
    %s110 = sld [smem:[#allocation3 + %s109]]
    %s111 = sadd.s32 %s105, 3
    %s112 = sld [smem:[#allocation3 + %s111]]
    %s113 = sadd.s32 %s105, 4
    %s114 = sld [smem:[#allocation3 + %s113]]
    %s115 = ssub.s32 %s108, %s106
    %p116 = scmp.gt.s32.totalorder %s115, 1
    %s117 = scalar_select %p116, %s115, 1
    %s118 = scvt.s32.f32 %s117
    %v119 = vstv %s118
    %v120 = vrcp.pop %v119
    %s121 = vtos %v120
    %s122 = ssub.s32 %s112, %s110
    %p123 = scmp.gt.s32.totalorder %s122, 1
    %s124 = scalar_select %p123, %s122, 1
    %s125 = scvt.s32.f32 %s124
    %v126 = vstv %s125
    %v127 = vrcp.pop %v126
    %s128 = vtos %v127
    %vm129 = vcmp.eq.s32.totalorder %v102, 0
    %v130 = vstv %s106
    %vm131 = vcmp.ge.s32.totalorder %v104, %v130
    %vm132 = vmand %vm129, %vm131
    %v133 = vstv %s108
    %vm134 = vcmp.lt.s32.totalorder %v104, %v133
    %vm135 = vmand %vm132, %vm134
    %vm136 = vcmp.eq.s32.totalorder %v102, 1
    %v137 = vstv %s110
    %vm138 = vcmp.ge.s32.totalorder %v104, %v137
    %vm139 = vmand %vm136, %vm138
    %v140 = vstv %s112
    %vm141 = vcmp.lt.s32.totalorder %v104, %v140
    %vm142 = vmand %vm139, %vm141
    %vm143 = vmor %vm135, %vm142
    %vm144 = vcmp.eq.s32.totalorder %v102, 2
    %v145 = vstv %s114
    %vm146 = vcmp.eq.s32.totalorder %v104, %v145
    %vm147 = vmand %vm144, %vm146
    %vm148 = vmor %vm143, %vm147
    %vm149 = vmand 1, %vm148
    %vm150 = vmand 0, %vm148
    %v151 = vstv %s128
    %v152 = vsel %vm136, %v151, 1.0
    %v153 = vstv %s121
    %v154 = vsel %vm129, %v153, %v152
    %v155 = vsel %vm149, %v154, 0.0
    %v156 = vsel %vm150, %v154, 0.0
    %s157 = sadd.s32 %s100, 1
    %s158 = smul.u32 %s157, 128
    %s159 = sld [smem:[#allocation3 + %s158]]
    %s160 = sadd.s32 %s158, 1
    %s161 = sld [smem:[#allocation3 + %s160]]
    %s162 = sadd.s32 %s158, 2
    %s163 = sld [smem:[#allocation3 + %s162]]
    %s164 = sadd.s32 %s158, 3
    %s165 = sld [smem:[#allocation3 + %s164]]
    %s166 = sadd.s32 %s158, 4
    %s167 = sld [smem:[#allocation3 + %s166]]
    %s168 = ssub.s32 %s161, %s159
    %p169 = scmp.gt.s32.totalorder %s168, 1
    %s170 = scalar_select %p169, %s168, 1
    %s171 = scvt.s32.f32 %s170
    %v172 = vstv %s171
    %v173 = vrcp.pop %v172
    %s174 = vtos %v173
    %s175 = ssub.s32 %s165, %s163
    %p176 = scmp.gt.s32.totalorder %s175, 1
    %s177 = scalar_select %p176, %s175, 1
    %s178 = scvt.s32.f32 %s177
    %v179 = vstv %s178
    %v180 = vrcp.pop %v179
    %s181 = vtos %v180
    %v182 = vstv %s159
    %vm183 = vcmp.ge.s32.totalorder %v104, %v182
    %vm184 = vmand %vm129, %vm183
    %v185 = vstv %s161
    %vm186 = vcmp.lt.s32.totalorder %v104, %v185
    %vm187 = vmand %vm184, %vm186
    %v188 = vstv %s163
    %vm189 = vcmp.ge.s32.totalorder %v104, %v188
    %vm190 = vmand %vm136, %vm189
    %v191 = vstv %s165
    %vm192 = vcmp.lt.s32.totalorder %v104, %v191
    %vm193 = vmand %vm190, %vm192
    %vm194 = vmor %vm187, %vm193
    %v195 = vstv %s167
    %vm196 = vcmp.eq.s32.totalorder %v104, %v195
    %vm197 = vmand %vm144, %vm196
    %vm198 = vmor %vm194, %vm197
    %vm199 = vmand 0, %vm198
    %vm200 = vmand 1, %vm198
    %v201 = vstv %s181
    %v202 = vsel %vm136, %v201, 1.0
    %v203 = vstv %s174
    %v204 = vsel %vm129, %v203, %v202
    %v205 = vsel %vm199, %v204, %v155
    %v206 = vsel %vm200, %v204, %v156
    %v207 = vsel %vm199, %v204, %v156
    %s208 = sadd.s32 %s100, 2
    %s209 = smul.u32 %s208, 128
    %s210 = sld [smem:[#allocation3 + %s209]]
    %s211 = sadd.s32 %s209, 1
    %s212 = sld [smem:[#allocation3 + %s211]]
    %s213 = sadd.s32 %s209, 2
    %s214 = sld [smem:[#allocation3 + %s213]]
    %s215 = sadd.s32 %s209, 3
    %s216 = sld [smem:[#allocation3 + %s215]]
    %s217 = sadd.s32 %s209, 4
    %s218 = sld [smem:[#allocation3 + %s217]]
    %s219 = ssub.s32 %s212, %s210
    %p220 = scmp.gt.s32.totalorder %s219, 1
    %s221 = scalar_select %p220, %s219, 1
    %s222 = scvt.s32.f32 %s221
    %v223 = vstv %s222
    %v224 = vrcp.pop %v223
    %s225 = vtos %v224
    %s226 = ssub.s32 %s216, %s214
    %p227 = scmp.gt.s32.totalorder %s226, 1
    %s228 = scalar_select %p227, %s226, 1
    %s229 = scvt.s32.f32 %s228
    %v230 = vstv %s229
    %v231 = vrcp.pop %v230
    %s232 = vtos %v231
    %v233 = vstv %s210
    %vm234 = vcmp.ge.s32.totalorder %v104, %v233
    %vm235 = vmand %vm129, %vm234
    %v236 = vstv %s212
    %vm237 = vcmp.lt.s32.totalorder %v104, %v236
    %vm238 = vmand %vm235, %vm237
    %v239 = vstv %s214
    %vm240 = vcmp.ge.s32.totalorder %v104, %v239
    %vm241 = vmand %vm136, %vm240
    %v242 = vstv %s216
    %vm243 = vcmp.lt.s32.totalorder %v104, %v242
    %vm244 = vmand %vm241, %vm243
    %vm245 = vmor %vm238, %vm244
    %v246 = vstv %s218
    %vm247 = vcmp.eq.s32.totalorder %v104, %v246
    %vm248 = vmand %vm144, %vm247
    %vm249 = vmor %vm245, %vm248
    %vm250 = vmand 0, %vm249
    %vm251 = vmand 1, %vm249
    %v252 = vstv %s232
    %v253 = vsel %vm136, %v252, 1.0
    %v254 = vstv %s225
    %v255 = vsel %vm129, %v254, %v253
    %v256 = vsel %vm250, %v255, %v205
    %v257 = vsel %vm250, %v255, %v206
    %v258 = vsel %vm251, %v255, %v207
    %v259 = vsel %vm250, %v255, %v207
    %s260 = sadd.s32 %s100, 3
    %s261 = smul.u32 %s260, 128
    %s262 = sld [smem:[#allocation3 + %s261]]
    %s263 = sadd.s32 %s261, 1
    %s264 = sld [smem:[#allocation3 + %s263]]
    %s265 = sadd.s32 %s261, 2
    %s266 = sld [smem:[#allocation3 + %s265]]
    %s267 = sadd.s32 %s261, 3
    %s268 = sld [smem:[#allocation3 + %s267]]
    %s269 = sadd.s32 %s261, 4
    %s270 = sld [smem:[#allocation3 + %s269]]
    %s271 = ssub.s32 %s264, %s262
    %p272 = scmp.gt.s32.totalorder %s271, 1
    %s273 = scalar_select %p272, %s271, 1
    %s274 = scvt.s32.f32 %s273
    %v275 = vstv %s274
    %v276 = vrcp.pop %v275
    %s277 = vtos %v276
    %s278 = ssub.s32 %s268, %s266
    %p279 = scmp.gt.s32.totalorder %s278, 1
    %s280 = scalar_select %p279, %s278, 1
    %s281 = scvt.s32.f32 %s280
    %v282 = vstv %s281
    %v283 = vrcp.pop %v282
    %s284 = vtos %v283
    %v285 = vstv %s262
    %vm286 = vcmp.ge.s32.totalorder %v104, %v285
    %vm287 = vmand %vm129, %vm286
    %v288 = vstv %s264
    %vm289 = vcmp.lt.s32.totalorder %v104, %v288
    %vm290 = vmand %vm287, %vm289
    %v291 = vstv %s266
    %vm292 = vcmp.ge.s32.totalorder %v104, %v291
    %vm293 = vmand %vm136, %vm292
    %v294 = vstv %s268
    %vm295 = vcmp.lt.s32.totalorder %v104, %v294
    %vm296 = vmand %vm293, %vm295
    %vm297 = vmor %vm290, %vm296
    %v298 = vstv %s270
    %vm299 = vcmp.eq.s32.totalorder %v104, %v298
    %vm300 = vmand %vm144, %vm299
    %vm301 = vmor %vm297, %vm300
    %vm302 = vmand 0, %vm301
    %vm303 = vmand 1, %vm301
    %v304 = vstv %s284
    %v305 = vsel %vm136, %v304, 1.0
    %v306 = vstv %s277
    %v307 = vsel %vm129, %v306, %v305
    %v308 = vsel %vm302, %v307, %v256
    %v309 = vsel %vm302, %v307, %v257
    %v310 = vsel %vm302, %v307, %v258
    %v311 = vsel %vm303, %v307, %v259
    %v312 = vsel %vm302, %v307, %v259
    %s313 = sadd.s32 %s100, 4
    %s314 = smul.u32 %s313, 128
    %s315 = sld [smem:[#allocation3 + %s314]]
    %s316 = sadd.s32 %s314, 1
    %s317 = sld [smem:[#allocation3 + %s316]]
    %s318 = sadd.s32 %s314, 2
    %s319 = sld [smem:[#allocation3 + %s318]]
    %s320 = sadd.s32 %s314, 3
    %s321 = sld [smem:[#allocation3 + %s320]]
    %s322 = sadd.s32 %s314, 4
    %s323 = sld [smem:[#allocation3 + %s322]]
    %s324 = ssub.s32 %s317, %s315
    %p325 = scmp.gt.s32.totalorder %s324, 1
    %s326 = scalar_select %p325, %s324, 1
    %s327 = scvt.s32.f32 %s326
    %v328 = vstv %s327
    %v329 = vrcp.pop %v328
    %s330 = vtos %v329
    %s331 = ssub.s32 %s321, %s319
    %p332 = scmp.gt.s32.totalorder %s331, 1
    %s333 = scalar_select %p332, %s331, 1
    %s334 = scvt.s32.f32 %s333
    %v335 = vstv %s334
    %v336 = vrcp.pop %v335
    %s337 = vtos %v336
    %v338 = vstv %s315
    %vm339 = vcmp.ge.s32.totalorder %v104, %v338
    %vm340 = vmand %vm129, %vm339
    %v341 = vstv %s317
    %vm342 = vcmp.lt.s32.totalorder %v104, %v341
    %vm343 = vmand %vm340, %vm342
    %v344 = vstv %s319
    %vm345 = vcmp.ge.s32.totalorder %v104, %v344
    %vm346 = vmand %vm136, %vm345
    %v347 = vstv %s321
    %vm348 = vcmp.lt.s32.totalorder %v104, %v347
    %vm349 = vmand %vm346, %vm348
    %vm350 = vmor %vm343, %vm349
    %v351 = vstv %s323
    %vm352 = vcmp.eq.s32.totalorder %v104, %v351
    %vm353 = vmand %vm144, %vm352
    %vm354 = vmor %vm350, %vm353
    %vm355 = vmand 0, %vm354
    %vm356 = vmand 1, %vm354
    %v357 = vstv %s337
    %v358 = vsel %vm136, %v357, 1.0
    %v359 = vstv %s330
    %v360 = vsel %vm129, %v359, %v358
    %v361 = vsel %vm355, %v360, %v308
    %v362 = vsel %vm355, %v360, %v309
    %v363 = vsel %vm355, %v360, %v310
    %v364 = vsel %vm355, %v360, %v311
    %v365 = vsel %vm356, %v360, %v312
    %v366 = vsel %vm355, %v360, %v312
    %s367 = sadd.s32 %s100, 5
    %s368 = smul.u32 %s367, 128
    %s369 = sld [smem:[#allocation3 + %s368]]
    %s370 = sadd.s32 %s368, 1
    %s371 = sld [smem:[#allocation3 + %s370]]
    %s372 = sadd.s32 %s368, 2
    %s373 = sld [smem:[#allocation3 + %s372]]
    %s374 = sadd.s32 %s368, 3
    %s375 = sld [smem:[#allocation3 + %s374]]
    %s376 = sadd.s32 %s368, 4
    %s377 = sld [smem:[#allocation3 + %s376]]
    %s378 = ssub.s32 %s371, %s369
    %p379 = scmp.gt.s32.totalorder %s378, 1
    %s380 = scalar_select %p379, %s378, 1
    %s381 = scvt.s32.f32 %s380
    %v382 = vstv %s381
    %v383 = vrcp.pop %v382
    %s384 = vtos %v383
    %s385 = ssub.s32 %s375, %s373
    %p386 = scmp.gt.s32.totalorder %s385, 1
    %s387 = scalar_select %p386, %s385, 1
    %s388 = scvt.s32.f32 %s387
    %v389 = vstv %s388
    %v390 = vrcp.pop %v389
    %s391 = vtos %v390
    %v392 = vstv %s369
    %vm393 = vcmp.ge.s32.totalorder %v104, %v392
    %vm394 = vmand %vm129, %vm393
    %v395 = vstv %s371
    %vm396 = vcmp.lt.s32.totalorder %v104, %v395
    %vm397 = vmand %vm394, %vm396
    %v398 = vstv %s373
    %vm399 = vcmp.ge.s32.totalorder %v104, %v398
    %vm400 = vmand %vm136, %vm399
    %v401 = vstv %s375
    %vm402 = vcmp.lt.s32.totalorder %v104, %v401
    %vm403 = vmand %vm400, %vm402
    %vm404 = vmor %vm397, %vm403
    %v405 = vstv %s377
    %vm406 = vcmp.eq.s32.totalorder %v104, %v405
    %vm407 = vmand %vm144, %vm406
    %vm408 = vmor %vm404, %vm407
    %vm409 = vmand 0, %vm408
    %vm410 = vmand 1, %vm408
    %v411 = vstv %s391
    %v412 = vsel %vm136, %v411, 1.0
    %v413 = vstv %s384
    %v414 = vsel %vm129, %v413, %v412
    %v415 = vsel %vm409, %v414, %v361
    %v416 = vsel %vm409, %v414, %v362
    %v417 = vsel %vm409, %v414, %v363
    %v418 = vsel %vm409, %v414, %v364
    %v419 = vsel %vm409, %v414, %v365
    %v420 = vsel %vm410, %v414, %v366
    %v421 = vsel %vm409, %v414, %v366
    %s422 = sadd.s32 %s100, 6
    %s423 = smul.u32 %s422, 128
    %s424 = sld [smem:[#allocation3 + %s423]]
    %s425 = sadd.s32 %s423, 1
    %s426 = sld [smem:[#allocation3 + %s425]]
    %s427 = sadd.s32 %s423, 2
    %s428 = sld [smem:[#allocation3 + %s427]]
    %s429 = sadd.s32 %s423, 3
    %s430 = sld [smem:[#allocation3 + %s429]]
    %s431 = sadd.s32 %s423, 4
    %s432 = sld [smem:[#allocation3 + %s431]]
    %s433 = ssub.s32 %s426, %s424
    %p434 = scmp.gt.s32.totalorder %s433, 1
    %s435 = scalar_select %p434, %s433, 1
    %s436 = scvt.s32.f32 %s435
    %v437 = vstv %s436
    %v438 = vrcp.pop %v437
    %s439 = vtos %v438
    %s440 = ssub.s32 %s430, %s428
    %p441 = scmp.gt.s32.totalorder %s440, 1
    %s442 = scalar_select %p441, %s440, 1
    %s443 = scvt.s32.f32 %s442
    %v444 = vstv %s443
    %v445 = vrcp.pop %v444
    %s446 = vtos %v445
    %v447 = vstv %s424
    %vm448 = vcmp.ge.s32.totalorder %v104, %v447
    %vm449 = vmand %vm129, %vm448
    %v450 = vstv %s426
    %vm451 = vcmp.lt.s32.totalorder %v104, %v450
    %vm452 = vmand %vm449, %vm451
    %v453 = vstv %s428
    %vm454 = vcmp.ge.s32.totalorder %v104, %v453
    %vm455 = vmand %vm136, %vm454
    %v456 = vstv %s430
    %vm457 = vcmp.lt.s32.totalorder %v104, %v456
    %vm458 = vmand %vm455, %vm457
    %vm459 = vmor %vm452, %vm458
    %v460 = vstv %s432
    %vm461 = vcmp.eq.s32.totalorder %v104, %v460
    %vm462 = vmand %vm144, %vm461
    %vm463 = vmor %vm459, %vm462
    %vm464 = vmand 0, %vm463
    %vm465 = vmand 1, %vm463
    %v466 = vstv %s446
    %v467 = vsel %vm136, %v466, 1.0
    %v468 = vstv %s439
    %v469 = vsel %vm129, %v468, %v467
    %v470 = vsel %vm464, %v469, %v415
    %v471 = vsel %vm464, %v469, %v416
    %v472 = vsel %vm464, %v469, %v417
    %v473 = vsel %vm464, %v469, %v418
    %v474 = vsel %vm464, %v469, %v419
    %v475 = vsel %vm464, %v469, %v420
    %v476 = vsel %vm465, %v469, %v421
    %v477 = vsel %vm464, %v469, %v421
    %s478 = sadd.s32 %s100, 7
    %s479 = smul.u32 %s478, 128
    %s480 = sld [smem:[#allocation3 + %s479]]
    %s481 = sadd.s32 %s479, 1
    %s482 = sld [smem:[#allocation3 + %s481]]
    %s483 = sadd.s32 %s479, 2
    %s484 = sld [smem:[#allocation3 + %s483]]
    %s485 = sadd.s32 %s479, 3
    %s486 = sld [smem:[#allocation3 + %s485]]
    %s487 = sadd.s32 %s479, 4
    %s488 = sld [smem:[#allocation3 + %s487]]
    %s489 = ssub.s32 %s482, %s480
    %p490 = scmp.gt.s32.totalorder %s489, 1
    %s491 = scalar_select %p490, %s489, 1
    %s492 = scvt.s32.f32 %s491
    %v493 = vstv %s492
    %v494 = vrcp.pop %v493
    %s495 = vtos %v494
    %s496 = ssub.s32 %s486, %s484
    %p497 = scmp.gt.s32.totalorder %s496, 1
    %s498 = scalar_select %p497, %s496, 1
    %s499 = scvt.s32.f32 %s498
    %v500 = vstv %s499
    %v501 = vrcp.pop %v500
    %s502 = vtos %v501
    %v503 = vstv %s480
    %vm504 = vcmp.ge.s32.totalorder %v104, %v503
    %vm505 = vmand %vm129, %vm504
    %v506 = vstv %s482
    %vm507 = vcmp.lt.s32.totalorder %v104, %v506
    %vm508 = vmand %vm505, %vm507
    %v509 = vstv %s484
    %vm510 = vcmp.ge.s32.totalorder %v104, %v509
    %vm511 = vmand %vm136, %vm510
    %v512 = vstv %s486
    %vm513 = vcmp.lt.s32.totalorder %v104, %v512
    %vm514 = vmand %vm511, %vm513
    %vm515 = vmor %vm508, %vm514
    %v516 = vstv %s488
    %vm517 = vcmp.eq.s32.totalorder %v104, %v516
    %vm518 = vmand %vm144, %vm517
    %vm519 = vmor %vm515, %vm518
    %vm520 = vmand 0, %vm519
    %vm521 = vmand 1, %vm519
    %v522 = vstv %s502
    %v523 = vsel %vm136, %v522, 1.0
    %v524 = vstv %s495
    %v525 = vsel %vm129, %v524, %v523
    %v526 = vsel %vm520, %v525, %v470
    %v527 = vsel %vm520, %v525, %v471
    %v528 = vsel %vm520, %v525, %v472
    %v529 = vsel %vm520, %v525, %v473
    %v530 = vsel %vm520, %v525, %v474
    %v531 = vsel %vm520, %v525, %v475
    %v532 = vsel %vm520, %v525, %v476
    %v533 = vsel %vm521, %v525, %v477
    %v534 = vld [vmem:[#allocation4] sm:$0xff]
    %v535 = vld [vmem:[#allocation4 + $0x8] sm:$0xff]
    %v536 = vld [vmem:[#allocation4 + $0x10] sm:$0xff]
    %v537 = vld [vmem:[#allocation4 + $0x18] sm:$0xff]
    %v538 = vld [vmem:[#allocation4 + $0x20] sm:$0xff]
    %v539 = vld [vmem:[#allocation4 + $0x28] sm:$0xff]
    %v540 = vld [vmem:[#allocation4 + $0x30] sm:$0xff]
    %v541 = vld [vmem:[#allocation4 + $0x38] sm:$0xff]
    %v542 = vld [vmem:[#allocation4 + $0x40] sm:$0xff]
    %v543 = vld [vmem:[#allocation4 + $0x48] sm:$0xff]
    %v544 = vld [vmem:[#allocation4 + $0x50] sm:$0xff]
    %v545 = vld [vmem:[#allocation4 + $0x58] sm:$0xff]
    %v546 = vld [vmem:[#allocation4 + $0x60] sm:$0xff]
    %v547 = vld [vmem:[#allocation4 + $0x68] sm:$0xff]
    %v548 = vld [vmem:[#allocation4 + $0x70] sm:$0xff]
    %v549 = vld [vmem:[#allocation4 + $0x78] sm:$0xff]
    %vm550 = vcmask 130048
    %v552 = vsel %vm550, %v526, 0
    %554 = vmatprep.subr.mxu0 0.0
    %555 = vmatpush1.msra.mxu0 %v534
    %556 = vmatprep.subr.mxu0 0.0
    %557 = vmatpush1.msra.mxu0 %v535
    %558 = vmatprep.subr.mxu0 0.0
    %559 = vmatpush1.msra.mxu0 0.0
    %560 = vmatprep.subr.mxu0 0.0
    %561 = vmatpush1.msra.mxu0 0.0
    %562 = vmatprep.subr.mxu0 0.0
    %563 = vmatpush1.msra.mxu0 0.0
    %564 = vmatprep.subr.mxu0 0.0
    %565 = vmatpush1.msra.mxu0 0.0
    %566 = vmatprep.subr.mxu0 0.0
    %567 = vmatpush1.msra.mxu0 0.0
    %568 = vmatprep.subr.mxu0 0.0
    %569 = vmatpush1.msra.mxu0 0.0
    %570 = vmatprep.subr.mxu0 0.0
    %571 = vmatpush1.msra.mxu0 0.0
    %572 = vmatprep.subr.mxu0 0.0
    %573 = vmatpush1.msra.mxu0 0.0
    %574 = vmatprep.subr.mxu0 0.0
    %575 = vmatpush1.msra.mxu0 0.0
    %576 = vmatprep.subr.mxu0 0.0
    %577 = vmatpush1.msra.mxu0 0.0
    %578 = vmatprep.subr.mxu0 0.0
    %579 = vmatpush1.msra.mxu0 0.0
    %580 = vmatprep.subr.mxu0 0.0
    %581 = vmatpush1.msra.mxu0 0.0
    %582 = vmatprep.subr.mxu0 0.0
    %583 = vmatpush1.msra.mxu0 0.0
    %584 = vmatprep.subr.mxu0 0.0
    %585 = vmatpush1.msra.mxu0 0.0
    %586 = vmatprep.subr.mxu0 0.0
    %587 = vmatpush1.msra.mxu0 0.0
    %588 = vmatprep.subr.mxu0 0.0
    %589 = vmatpush1.msra.mxu0 0.0
    %590 = vmatprep.subr.mxu0 0.0
    %591 = vmatpush1.msra.mxu0 0.0
    %592 = vmatprep.subr.mxu0 0.0
    %593 = vmatpush1.msra.mxu0 0.0
    %594 = vmatprep.subr.mxu0 0.0
    %595 = vmatpush1.msra.mxu0 0.0
    %596 = vmatprep.subr.mxu0 0.0
    %597 = vmatpush1.msra.mxu0 0.0
    %598 = vmatprep.subr.mxu0 0.0
    %599 = vmatpush1.msra.mxu0 0.0
    %600 = vmatprep.subr.mxu0 0.0
    %601 = vmatpush1.msra.mxu0 0.0
    %602 = vmatprep.subr.mxu0 0.0
    %603 = vmatpush1.msra.mxu0 0.0
    %604 = vmatprep.subr.mxu0 0.0
    %605 = vmatpush1.msra.mxu0 0.0
    %606 = vmatprep.subr.mxu0 0.0
    %607 = vmatpush1.msra.mxu0 0.0
    %608 = vmatprep.subr.mxu0 0.0
    %609 = vmatpush1.msra.mxu0 0.0
    %610 = vmatprep.subr.mxu0 0.0
    %611 = vmatpush1.msra.mxu0 0.0
    %612 = vmatprep.subr.mxu0 0.0
    %613 = vmatpush1.msra.mxu0 0.0
    %614 = vmatprep.subr.mxu0 0.0
    %615 = vmatpush1.msra.mxu0 0.0
    %616 = vmatprep.subr.mxu0 0.0
    %617 = vmatpush1.msra.mxu0 0.0
    %618 = vmatprep.mubr.f32.mxu0 0.0
    %619 = vmatmul.mubr.f32.gmra.mrb[0].mxu0 %v552
    %v620 = vpop.f32.mrb[0].mxu0
    %v621 = vadd.f32 0.0, %v620
    %v622 = vpop.f32.mrb[0].mxu0
    %623 = vdwg.mxu0
    %v625 = vsel %vm550, %v527, 0
    %627 = vmatprep.subr.mxu0 0.0
    %628 = vmatpush1.msra.mxu0 %v536
    %629 = vmatprep.subr.mxu0 0.0
    %630 = vmatpush1.msra.mxu0 %v537
    %631 = vmatprep.subr.mxu0 0.0
    %632 = vmatpush1.msra.mxu0 0.0
    %633 = vmatprep.subr.mxu0 0.0
    %634 = vmatpush1.msra.mxu0 0.0
    %635 = vmatprep.subr.mxu0 0.0
    %636 = vmatpush1.msra.mxu0 0.0
    %637 = vmatprep.subr.mxu0 0.0
    %638 = vmatpush1.msra.mxu0 0.0
    %639 = vmatprep.subr.mxu0 0.0
    %640 = vmatpush1.msra.mxu0 0.0
    %641 = vmatprep.subr.mxu0 0.0
    %642 = vmatpush1.msra.mxu0 0.0
    %643 = vmatprep.subr.mxu0 0.0
    %644 = vmatpush1.msra.mxu0 0.0
    %645 = vmatprep.subr.mxu0 0.0
    %646 = vmatpush1.msra.mxu0 0.0
    %647 = vmatprep.subr.mxu0 0.0
    %648 = vmatpush1.msra.mxu0 0.0
    %649 = vmatprep.subr.mxu0 0.0
    %650 = vmatpush1.msra.mxu0 0.0
    %651 = vmatprep.subr.mxu0 0.0
    %652 = vmatpush1.msra.mxu0 0.0
    %653 = vmatprep.subr.mxu0 0.0
    %654 = vmatpush1.msra.mxu0 0.0
    %655 = vmatprep.subr.mxu0 0.0
    %656 = vmatpush1.msra.mxu0 0.0
    %657 = vmatprep.subr.mxu0 0.0
    %658 = vmatpush1.msra.mxu0 0.0
    %659 = vmatprep.subr.mxu0 0.0
    %660 = vmatpush1.msra.mxu0 0.0
    %661 = vmatprep.subr.mxu0 0.0
    %662 = vmatpush1.msra.mxu0 0.0
    %663 = vmatprep.subr.mxu0 0.0
    %664 = vmatpush1.msra.mxu0 0.0
    %665 = vmatprep.subr.mxu0 0.0
    %666 = vmatpush1.msra.mxu0 0.0
    %667 = vmatprep.subr.mxu0 0.0
    %668 = vmatpush1.msra.mxu0 0.0
    %669 = vmatprep.subr.mxu0 0.0
    %670 = vmatpush1.msra.mxu0 0.0
    %671 = vmatprep.subr.mxu0 0.0
    %672 = vmatpush1.msra.mxu0 0.0
    %673 = vmatprep.subr.mxu0 0.0
    %674 = vmatpush1.msra.mxu0 0.0
    %675 = vmatprep.subr.mxu0 0.0
    %676 = vmatpush1.msra.mxu0 0.0
    %677 = vmatprep.subr.mxu0 0.0
    %678 = vmatpush1.msra.mxu0 0.0
    %679 = vmatprep.subr.mxu0 0.0
    %680 = vmatpush1.msra.mxu0 0.0
    %681 = vmatprep.subr.mxu0 0.0
    %682 = vmatpush1.msra.mxu0 0.0
    %683 = vmatprep.subr.mxu0 0.0
    %684 = vmatpush1.msra.mxu0 0.0
    %685 = vmatprep.subr.mxu0 0.0
    %686 = vmatpush1.msra.mxu0 0.0
    %687 = vmatprep.subr.mxu0 0.0
    %688 = vmatpush1.msra.mxu0 0.0
    %689 = vmatprep.subr.mxu0 0.0
    %690 = vmatpush1.msra.mxu0 0.0
    %691 = vmatprep.mubr.f32.mxu0 0.0
    %692 = vmatmul.mubr.f32.gmra.mrb[0].mxu0 %v625
    %v693 = vpop.f32.mrb[0].mxu0
    %v694 = vadd.f32 0.0, %v693
    %v695 = vpop.f32.mrb[0].mxu0
    %696 = vdwg.mxu0
    %v698 = vsel %vm550, %v528, 0
    %700 = vmatprep.subr.mxu0 0.0
    %701 = vmatpush1.msra.mxu0 %v538
    %702 = vmatprep.subr.mxu0 0.0
    %703 = vmatpush1.msra.mxu0 %v539
    %704 = vmatprep.subr.mxu0 0.0
    %705 = vmatpush1.msra.mxu0 0.0
    %706 = vmatprep.subr.mxu0 0.0
    %707 = vmatpush1.msra.mxu0 0.0
    %708 = vmatprep.subr.mxu0 0.0
    %709 = vmatpush1.msra.mxu0 0.0
    %710 = vmatprep.subr.mxu0 0.0
    %711 = vmatpush1.msra.mxu0 0.0
    %712 = vmatprep.subr.mxu0 0.0
    %713 = vmatpush1.msra.mxu0 0.0
    %714 = vmatprep.subr.mxu0 0.0
    %715 = vmatpush1.msra.mxu0 0.0
    %716 = vmatprep.subr.mxu0 0.0
    %717 = vmatpush1.msra.mxu0 0.0
    %718 = vmatprep.subr.mxu0 0.0
    %719 = vmatpush1.msra.mxu0 0.0
    %720 = vmatprep.subr.mxu0 0.0
    %721 = vmatpush1.msra.mxu0 0.0
    %722 = vmatprep.subr.mxu0 0.0
    %723 = vmatpush1.msra.mxu0 0.0
    %724 = vmatprep.subr.mxu0 0.0
    %725 = vmatpush1.msra.mxu0 0.0
    %726 = vmatprep.subr.mxu0 0.0
    %727 = vmatpush1.msra.mxu0 0.0
    %728 = vmatprep.subr.mxu0 0.0
    %729 = vmatpush1.msra.mxu0 0.0
    %730 = vmatprep.subr.mxu0 0.0
    %731 = vmatpush1.msra.mxu0 0.0
    %732 = vmatprep.subr.mxu0 0.0
    %733 = vmatpush1.msra.mxu0 0.0
    %734 = vmatprep.subr.mxu0 0.0
    %735 = vmatpush1.msra.mxu0 0.0
    %736 = vmatprep.subr.mxu0 0.0
    %737 = vmatpush1.msra.mxu0 0.0
    %738 = vmatprep.subr.mxu0 0.0
    %739 = vmatpush1.msra.mxu0 0.0
    %740 = vmatprep.subr.mxu0 0.0
    %741 = vmatpush1.msra.mxu0 0.0
    %742 = vmatprep.subr.mxu0 0.0
    %743 = vmatpush1.msra.mxu0 0.0
    %744 = vmatprep.subr.mxu0 0.0
    %745 = vmatpush1.msra.mxu0 0.0
    %746 = vmatprep.subr.mxu0 0.0
    %747 = vmatpush1.msra.mxu0 0.0
    %748 = vmatprep.subr.mxu0 0.0
    %749 = vmatpush1.msra.mxu0 0.0
    %750 = vmatprep.subr.mxu0 0.0
    %751 = vmatpush1.msra.mxu0 0.0
    %752 = vmatprep.subr.mxu0 0.0
    %753 = vmatpush1.msra.mxu0 0.0
    %754 = vmatprep.subr.mxu0 0.0
    %755 = vmatpush1.msra.mxu0 0.0
    %756 = vmatprep.subr.mxu0 0.0
    %757 = vmatpush1.msra.mxu0 0.0
    %758 = vmatprep.subr.mxu0 0.0
    %759 = vmatpush1.msra.mxu0 0.0
    %760 = vmatprep.subr.mxu0 0.0
    %761 = vmatpush1.msra.mxu0 0.0
    %762 = vmatprep.subr.mxu0 0.0
    %763 = vmatpush1.msra.mxu0 0.0
    %764 = vmatprep.mubr.f32.mxu0 0.0
    %765 = vmatmul.mubr.f32.gmra.mrb[0].mxu0 %v698
    %v766 = vpop.f32.mrb[0].mxu0
    %v767 = vadd.f32 0.0, %v766
    %v768 = vpop.f32.mrb[0].mxu0
    %769 = vdwg.mxu0
    %v771 = vsel %vm550, %v529, 0
    %773 = vmatprep.subr.mxu0 0.0
    %774 = vmatpush1.msra.mxu0 %v540
    %775 = vmatprep.subr.mxu0 0.0
    %776 = vmatpush1.msra.mxu0 %v541
    %777 = vmatprep.subr.mxu0 0.0
    %778 = vmatpush1.msra.mxu0 0.0
    %779 = vmatprep.subr.mxu0 0.0
    %780 = vmatpush1.msra.mxu0 0.0
    %781 = vmatprep.subr.mxu0 0.0
    %782 = vmatpush1.msra.mxu0 0.0
    %783 = vmatprep.subr.mxu0 0.0
    %784 = vmatpush1.msra.mxu0 0.0
    %785 = vmatprep.subr.mxu0 0.0
    %786 = vmatpush1.msra.mxu0 0.0
    %787 = vmatprep.subr.mxu0 0.0
    %788 = vmatpush1.msra.mxu0 0.0
    %789 = vmatprep.subr.mxu0 0.0
    %790 = vmatpush1.msra.mxu0 0.0
    %791 = vmatprep.subr.mxu0 0.0
    %792 = vmatpush1.msra.mxu0 0.0
    %793 = vmatprep.subr.mxu0 0.0
    %794 = vmatpush1.msra.mxu0 0.0
    %795 = vmatprep.subr.mxu0 0.0
    %796 = vmatpush1.msra.mxu0 0.0
    %797 = vmatprep.subr.mxu0 0.0
    %798 = vmatpush1.msra.mxu0 0.0
    %799 = vmatprep.subr.mxu0 0.0
    %800 = vmatpush1.msra.mxu0 0.0
    %801 = vmatprep.subr.mxu0 0.0
    %802 = vmatpush1.msra.mxu0 0.0
    %803 = vmatprep.subr.mxu0 0.0
    %804 = vmatpush1.msra.mxu0 0.0
    %805 = vmatprep.subr.mxu0 0.0
    %806 = vmatpush1.msra.mxu0 0.0
    %807 = vmatprep.subr.mxu0 0.0
    %808 = vmatpush1.msra.mxu0 0.0
    %809 = vmatprep.subr.mxu0 0.0
    %810 = vmatpush1.msra.mxu0 0.0
    %811 = vmatprep.subr.mxu0 0.0
    %812 = vmatpush1.msra.mxu0 0.0
    %813 = vmatprep.subr.mxu0 0.0
    %814 = vmatpush1.msra.mxu0 0.0
    %815 = vmatprep.subr.mxu0 0.0
    %816 = vmatpush1.msra.mxu0 0.0
    %817 = vmatprep.subr.mxu0 0.0
    %818 = vmatpush1.msra.mxu0 0.0
    %819 = vmatprep.subr.mxu0 0.0
    %820 = vmatpush1.msra.mxu0 0.0
    %821 = vmatprep.subr.mxu0 0.0
    %822 = vmatpush1.msra.mxu0 0.0
    %823 = vmatprep.subr.mxu0 0.0
    %824 = vmatpush1.msra.mxu0 0.0
    %825 = vmatprep.subr.mxu0 0.0
    %826 = vmatpush1.msra.mxu0 0.0
    %827 = vmatprep.subr.mxu0 0.0
    %828 = vmatpush1.msra.mxu0 0.0
    %829 = vmatprep.subr.mxu0 0.0
    %830 = vmatpush1.msra.mxu0 0.0
    %831 = vmatprep.subr.mxu0 0.0
    %832 = vmatpush1.msra.mxu0 0.0
    %833 = vmatprep.subr.mxu0 0.0
    %834 = vmatpush1.msra.mxu0 0.0
    %835 = vmatprep.subr.mxu0 0.0
    %836 = vmatpush1.msra.mxu0 0.0
    %837 = vmatprep.mubr.f32.mxu0 0.0
    %838 = vmatmul.mubr.f32.gmra.mrb[0].mxu0 %v771
    %v839 = vpop.f32.mrb[0].mxu0
    %v840 = vadd.f32 0.0, %v839
    %v841 = vpop.f32.mrb[0].mxu0
    %842 = vdwg.mxu0
    %v844 = vsel %vm550, %v530, 0
    %846 = vmatprep.subr.mxu0 0.0
    %847 = vmatpush1.msra.mxu0 %v542
    %848 = vmatprep.subr.mxu0 0.0
    %849 = vmatpush1.msra.mxu0 %v543
    %850 = vmatprep.subr.mxu0 0.0
    %851 = vmatpush1.msra.mxu0 0.0
    %852 = vmatprep.subr.mxu0 0.0
    %853 = vmatpush1.msra.mxu0 0.0
    %854 = vmatprep.subr.mxu0 0.0
    %855 = vmatpush1.msra.mxu0 0.0
    %856 = vmatprep.subr.mxu0 0.0
    %857 = vmatpush1.msra.mxu0 0.0
    %858 = vmatprep.subr.mxu0 0.0
    %859 = vmatpush1.msra.mxu0 0.0
    %860 = vmatprep.subr.mxu0 0.0
    %861 = vmatpush1.msra.mxu0 0.0
    %862 = vmatprep.subr.mxu0 0.0
    %863 = vmatpush1.msra.mxu0 0.0
    %864 = vmatprep.subr.mxu0 0.0
    %865 = vmatpush1.msra.mxu0 0.0
    %866 = vmatprep.subr.mxu0 0.0
    %867 = vmatpush1.msra.mxu0 0.0
    %868 = vmatprep.subr.mxu0 0.0
    %869 = vmatpush1.msra.mxu0 0.0
    %870 = vmatprep.subr.mxu0 0.0
    %871 = vmatpush1.msra.mxu0 0.0
    %872 = vmatprep.subr.mxu0 0.0
    %873 = vmatpush1.msra.mxu0 0.0
    %874 = vmatprep.subr.mxu0 0.0
    %875 = vmatpush1.msra.mxu0 0.0
    %876 = vmatprep.subr.mxu0 0.0
    %877 = vmatpush1.msra.mxu0 0.0
    %878 = vmatprep.subr.mxu0 0.0
    %879 = vmatpush1.msra.mxu0 0.0
    %880 = vmatprep.subr.mxu0 0.0
    %881 = vmatpush1.msra.mxu0 0.0
    %882 = vmatprep.subr.mxu0 0.0
    %883 = vmatpush1.msra.mxu0 0.0
    %884 = vmatprep.subr.mxu0 0.0
    %885 = vmatpush1.msra.mxu0 0.0
    %886 = vmatprep.subr.mxu0 0.0
    %887 = vmatpush1.msra.mxu0 0.0
    %888 = vmatprep.subr.mxu0 0.0
    %889 = vmatpush1.msra.mxu0 0.0
    %890 = vmatprep.subr.mxu0 0.0
    %891 = vmatpush1.msra.mxu0 0.0
    %892 = vmatprep.subr.mxu0 0.0
    %893 = vmatpush1.msra.mxu0 0.0
    %894 = vmatprep.subr.mxu0 0.0
    %895 = vmatpush1.msra.mxu0 0.0
    %896 = vmatprep.subr.mxu0 0.0
    %897 = vmatpush1.msra.mxu0 0.0
    %898 = vmatprep.subr.mxu0 0.0
    %899 = vmatpush1.msra.mxu0 0.0
    %900 = vmatprep.subr.mxu0 0.0
    %901 = vmatpush1.msra.mxu0 0.0
    %902 = vmatprep.subr.mxu0 0.0
    %903 = vmatpush1.msra.mxu0 0.0
    %904 = vmatprep.subr.mxu0 0.0
    %905 = vmatpush1.msra.mxu0 0.0
    %906 = vmatprep.subr.mxu0 0.0
    %907 = vmatpush1.msra.mxu0 0.0
    %908 = vmatprep.subr.mxu0 0.0
    %909 = vmatpush1.msra.mxu0 0.0
    %910 = vmatprep.mubr.f32.mxu0 0.0
    %911 = vmatmul.mubr.f32.gmra.mrb[0].mxu0 %v844
    %v912 = vpop.f32.mrb[0].mxu0
    %v913 = vadd.f32 0.0, %v912
    %v914 = vpop.f32.mrb[0].mxu0
    %915 = vdwg.mxu0
    %v917 = vsel %vm550, %v531, 0
    %919 = vmatprep.subr.mxu0 0.0
    %920 = vmatpush1.msra.mxu0 %v544
    %921 = vmatprep.subr.mxu0 0.0
    %922 = vmatpush1.msra.mxu0 %v545
    %923 = vmatprep.subr.mxu0 0.0
    %924 = vmatpush1.msra.mxu0 0.0
    %925 = vmatprep.subr.mxu0 0.0
    %926 = vmatpush1.msra.mxu0 0.0
    %927 = vmatprep.subr.mxu0 0.0
    %928 = vmatpush1.msra.mxu0 0.0
    %929 = vmatprep.subr.mxu0 0.0
    %930 = vmatpush1.msra.mxu0 0.0
    %931 = vmatprep.subr.mxu0 0.0
    %932 = vmatpush1.msra.mxu0 0.0
    %933 = vmatprep.subr.mxu0 0.0
    %934 = vmatpush1.msra.mxu0 0.0
    %935 = vmatprep.subr.mxu0 0.0
    %936 = vmatpush1.msra.mxu0 0.0
    %937 = vmatprep.subr.mxu0 0.0
    %938 = vmatpush1.msra.mxu0 0.0
    %939 = vmatprep.subr.mxu0 0.0
    %940 = vmatpush1.msra.mxu0 0.0
    %941 = vmatprep.subr.mxu0 0.0
    %942 = vmatpush1.msra.mxu0 0.0
    %943 = vmatprep.subr.mxu0 0.0
    %944 = vmatpush1.msra.mxu0 0.0
    %945 = vmatprep.subr.mxu0 0.0
    %946 = vmatpush1.msra.mxu0 0.0
    %947 = vmatprep.subr.mxu0 0.0
    %948 = vmatpush1.msra.mxu0 0.0
    %949 = vmatprep.subr.mxu0 0.0
    %950 = vmatpush1.msra.mxu0 0.0
    %951 = vmatprep.subr.mxu0 0.0
    %952 = vmatpush1.msra.mxu0 0.0
    %953 = vmatprep.subr.mxu0 0.0
    %954 = vmatpush1.msra.mxu0 0.0
    %955 = vmatprep.subr.mxu0 0.0
    %956 = vmatpush1.msra.mxu0 0.0
    %957 = vmatprep.subr.mxu0 0.0
    %958 = vmatpush1.msra.mxu0 0.0
    %959 = vmatprep.subr.mxu0 0.0
    %960 = vmatpush1.msra.mxu0 0.0
    %961 = vmatprep.subr.mxu0 0.0
    %962 = vmatpush1.msra.mxu0 0.0
    %963 = vmatprep.subr.mxu0 0.0
    %964 = vmatpush1.msra.mxu0 0.0
    %965 = vmatprep.subr.mxu0 0.0
    %966 = vmatpush1.msra.mxu0 0.0
    %967 = vmatprep.subr.mxu0 0.0
    %968 = vmatpush1.msra.mxu0 0.0
    %969 = vmatprep.subr.mxu0 0.0
    %970 = vmatpush1.msra.mxu0 0.0
    %971 = vmatprep.subr.mxu0 0.0
    %972 = vmatpush1.msra.mxu0 0.0
    %973 = vmatprep.subr.mxu0 0.0
    %974 = vmatpush1.msra.mxu0 0.0
    %975 = vmatprep.subr.mxu0 0.0
    %976 = vmatpush1.msra.mxu0 0.0
    %977 = vmatprep.subr.mxu0 0.0
    %978 = vmatpush1.msra.mxu0 0.0
    %979 = vmatprep.subr.mxu0 0.0
    %980 = vmatpush1.msra.mxu0 0.0
    %981 = vmatprep.subr.mxu0 0.0
    %982 = vmatpush1.msra.mxu0 0.0
    %983 = vmatprep.mubr.f32.mxu0 0.0
    %984 = vmatmul.mubr.f32.gmra.mrb[0].mxu0 %v917
    %v985 = vpop.f32.mrb[0].mxu0
    %v986 = vadd.f32 0.0, %v985
    %v987 = vpop.f32.mrb[0].mxu0
    %988 = vdwg.mxu0
    %v990 = vsel %vm550, %v532, 0
    %992 = vmatprep.subr.mxu0 0.0
    %993 = vmatpush1.msra.mxu0 %v546
    %994 = vmatprep.subr.mxu0 0.0
    %995 = vmatpush1.msra.mxu0 %v547
    %996 = vmatprep.subr.mxu0 0.0
    %997 = vmatpush1.msra.mxu0 0.0
    %998 = vmatprep.subr.mxu0 0.0
    %999 = vmatpush1.msra.mxu0 0.0
    %1000 = vmatprep.subr.mxu0 0.0
    %1001 = vmatpush1.msra.mxu0 0.0
    %1002 = vmatprep.subr.mxu0 0.0
    %1003 = vmatpush1.msra.mxu0 0.0
    %1004 = vmatprep.subr.mxu0 0.0
    %1005 = vmatpush1.msra.mxu0 0.0
    %1006 = vmatprep.subr.mxu0 0.0
    %1007 = vmatpush1.msra.mxu0 0.0
    %1008 = vmatprep.subr.mxu0 0.0
    %1009 = vmatpush1.msra.mxu0 0.0
    %1010 = vmatprep.subr.mxu0 0.0
    %1011 = vmatpush1.msra.mxu0 0.0
    %1012 = vmatprep.subr.mxu0 0.0
    %1013 = vmatpush1.msra.mxu0 0.0
    %1014 = vmatprep.subr.mxu0 0.0
    %1015 = vmatpush1.msra.mxu0 0.0
    %1016 = vmatprep.subr.mxu0 0.0
    %1017 = vmatpush1.msra.mxu0 0.0
    %1018 = vmatprep.subr.mxu0 0.0
    %1019 = vmatpush1.msra.mxu0 0.0
    %1020 = vmatprep.subr.mxu0 0.0
    %1021 = vmatpush1.msra.mxu0 0.0
    %1022 = vmatprep.subr.mxu0 0.0
    %1023 = vmatpush1.msra.mxu0 0.0
    %1024 = vmatprep.subr.mxu0 0.0
    %1025 = vmatpush1.msra.mxu0 0.0
    %1026 = vmatprep.subr.mxu0 0.0
    %1027 = vmatpush1.msra.mxu0 0.0
    %1028 = vmatprep.subr.mxu0 0.0
    %1029 = vmatpush1.msra.mxu0 0.0
    %1030 = vmatprep.subr.mxu0 0.0
    %1031 = vmatpush1.msra.mxu0 0.0
    %1032 = vmatprep.subr.mxu0 0.0
    %1033 = vmatpush1.msra.mxu0 0.0
    %1034 = vmatprep.subr.mxu0 0.0
    %1035 = vmatpush1.msra.mxu0 0.0
    %1036 = vmatprep.subr.mxu0 0.0
    %1037 = vmatpush1.msra.mxu0 0.0
    %1038 = vmatprep.subr.mxu0 0.0
    %1039 = vmatpush1.msra.mxu0 0.0
    %1040 = vmatprep.subr.mxu0 0.0
    %1041 = vmatpush1.msra.mxu0 0.0
    %1042 = vmatprep.subr.mxu0 0.0
    %1043 = vmatpush1.msra.mxu0 0.0
    %1044 = vmatprep.subr.mxu0 0.0
    %1045 = vmatpush1.msra.mxu0 0.0
    %1046 = vmatprep.subr.mxu0 0.0
    %1047 = vmatpush1.msra.mxu0 0.0
    %1048 = vmatprep.subr.mxu0 0.0
    %1049 = vmatpush1.msra.mxu0 0.0
    %1050 = vmatprep.subr.mxu0 0.0
    %1051 = vmatpush1.msra.mxu0 0.0
    %1052 = vmatprep.subr.mxu0 0.0
    %1053 = vmatpush1.msra.mxu0 0.0
    %1054 = vmatprep.subr.mxu0 0.0
    %1055 = vmatpush1.msra.mxu0 0.0
    %1056 = vmatprep.mubr.f32.mxu0 0.0
    %1057 = vmatmul.mubr.f32.gmra.mrb[0].mxu0 %v990
    %v1058 = vpop.f32.mrb[0].mxu0
    %v1059 = vadd.f32 0.0, %v1058
    %v1060 = vpop.f32.mrb[0].mxu0
    %1061 = vdwg.mxu0
    %v1063 = vsel %vm550, %v533, 0
    %1065 = vmatprep.subr.mxu0 0.0
    %1066 = vmatpush1.msra.mxu0 %v548
    %1067 = vmatprep.subr.mxu0 0.0
    %1068 = vmatpush1.msra.mxu0 %v549
    %1069 = vmatprep.subr.mxu0 0.0
    %1070 = vmatpush1.msra.mxu0 0.0
    %1071 = vmatprep.subr.mxu0 0.0
    %1072 = vmatpush1.msra.mxu0 0.0
    %1073 = vmatprep.subr.mxu0 0.0
    %1074 = vmatpush1.msra.mxu0 0.0
    %1075 = vmatprep.subr.mxu0 0.0
    %1076 = vmatpush1.msra.mxu0 0.0
    %1077 = vmatprep.subr.mxu0 0.0
    %1078 = vmatpush1.msra.mxu0 0.0
    %1079 = vmatprep.subr.mxu0 0.0
    %1080 = vmatpush1.msra.mxu0 0.0
    %1081 = vmatprep.subr.mxu0 0.0
    %1082 = vmatpush1.msra.mxu0 0.0
    %1083 = vmatprep.subr.mxu0 0.0
    %1084 = vmatpush1.msra.mxu0 0.0
    %1085 = vmatprep.subr.mxu0 0.0
    %1086 = vmatpush1.msra.mxu0 0.0
    %1087 = vmatprep.subr.mxu0 0.0
    %1088 = vmatpush1.msra.mxu0 0.0
    %1089 = vmatprep.subr.mxu0 0.0
    %1090 = vmatpush1.msra.mxu0 0.0
    %1091 = vmatprep.subr.mxu0 0.0
    %1092 = vmatpush1.msra.mxu0 0.0
    %1093 = vmatprep.subr.mxu0 0.0
    %1094 = vmatpush1.msra.mxu0 0.0
    %1095 = vmatprep.subr.mxu0 0.0
    %1096 = vmatpush1.msra.mxu0 0.0
    %1097 = vmatprep.subr.mxu0 0.0
    %1098 = vmatpush1.msra.mxu0 0.0
    %1099 = vmatprep.subr.mxu0 0.0
    %1100 = vmatpush1.msra.mxu0 0.0
    %1101 = vmatprep.subr.mxu0 0.0
    %1102 = vmatpush1.msra.mxu0 0.0
    %1103 = vmatprep.subr.mxu0 0.0
    %1104 = vmatpush1.msra.mxu0 0.0
    %1105 = vmatprep.subr.mxu0 0.0
    %1106 = vmatpush1.msra.mxu0 0.0
    %1107 = vmatprep.subr.mxu0 0.0
    %1108 = vmatpush1.msra.mxu0 0.0
    %1109 = vmatprep.subr.mxu0 0.0
    %1110 = vmatpush1.msra.mxu0 0.0
    %1111 = vmatprep.subr.mxu0 0.0
    %1112 = vmatpush1.msra.mxu0 0.0
    %1113 = vmatprep.subr.mxu0 0.0
    %1114 = vmatpush1.msra.mxu0 0.0
    %1115 = vmatprep.subr.mxu0 0.0
    %1116 = vmatpush1.msra.mxu0 0.0
    %1117 = vmatprep.subr.mxu0 0.0
    %1118 = vmatpush1.msra.mxu0 0.0
    %1119 = vmatprep.subr.mxu0 0.0
    %1120 = vmatpush1.msra.mxu0 0.0
    %1121 = vmatprep.subr.mxu0 0.0
    %1122 = vmatpush1.msra.mxu0 0.0
    %1123 = vmatprep.subr.mxu0 0.0
    %1124 = vmatpush1.msra.mxu0 0.0
    %1125 = vmatprep.subr.mxu0 0.0
    %1126 = vmatpush1.msra.mxu0 0.0
    %1127 = vmatprep.subr.mxu0 0.0
    %1128 = vmatpush1.msra.mxu0 0.0
    %1129 = vmatprep.mubr.f32.mxu0 0.0
    %1130 = vmatmul.mubr.f32.gmra.mrb[0].mxu0 %v1063
    %v1131 = vpop.f32.mrb[0].mxu0
    %v1132 = vadd.f32 0.0, %v1131
    %v1133 = vpop.f32.mrb[0].mxu0
    %1134 = vdwg.mxu0
    %v1135 = vld [vmem:[#allocation7] sm:$0xff]
    %v1136 = vld [vmem:[#allocation7 + $0x8] sm:$0xff]
    %v1137 = vld [vmem:[#allocation7 + $0x10] sm:$0xff]
    %v1138 = vld [vmem:[#allocation7 + $0x18] sm:$0xff]
    %v1139 = vld [vmem:[#allocation9] sm:$0xff]
    %v1140 = vld [vmem:[#allocation9 + $0x8] sm:$0xff]
    %v1141 = vld [vmem:[#allocation9 + $0x10] sm:$0xff]
    %v1142 = vld [vmem:[#allocation9 + $0x18] sm:$0xff]
    %v1151 = vrot.slane %v621, 1
    %vm1152 = vcmask 1041409
    %v1153 = vsel %vm1152, %v694, %v1151
    %v1154 = vrot.slane %v767, 7
    %vm1155 = vcmask 1042434
    %v1156 = vsel %vm1155, %v1154, %v1153
    %v1157 = vrot.slane %v840, 6
    %vm1158 = vcmask 1043459
    %v1159 = vsel %vm1158, %v1157, %v1156
    %v1160 = vrot.slane %v913, 5
    %vm1161 = vcmask 1044484
    %v1162 = vsel %vm1161, %v1160, %v1159
    %v1163 = vrot.slane %v986, 4
    %vm1164 = vcmask 1045509
    %v1165 = vsel %vm1164, %v1163, %v1162
    %v1166 = vrot.slane %v1059, 3
    %vm1167 = vcmask 1046534
    %v1168 = vsel %vm1167, %v1166, %v1165
    %v1169 = vrot.slane %v1132, 2
    %vm1170 = vcmask 1047559
    %v1171 = vsel %vm1170, %v1169, %v1168
    %vm1172 = vcmask 261120
    %v1173 = vsel %vm1172, %v1171, 0
    %1175 = vmatprep.subr.mxu0 0.0
    %1176 = vmatpush1.msra.mxu0 %v1139
    %1177 = vmatprep.subr.mxu0 0.0
    %1178 = vmatpush1.msra.mxu0 %v1140
    %1179 = vmatprep.subr.mxu0 0.0
    %1180 = vmatpush1.msra.mxu0 %v1141
    %1181 = vmatprep.subr.mxu0 0.0
    %1182 = vmatpush1.msra.mxu0 %v1142
    %1183 = vmatprep.subr.mxu0 0.0
    %1184 = vmatpush1.msra.mxu0 0.0
    %1185 = vmatprep.subr.mxu0 0.0
    %1186 = vmatpush1.msra.mxu0 0.0
    %1187 = vmatprep.subr.mxu0 0.0
    %1188 = vmatpush1.msra.mxu0 0.0
    %1189 = vmatprep.subr.mxu0 0.0
    %1190 = vmatpush1.msra.mxu0 0.0
    %1191 = vmatprep.subr.mxu0 0.0
    %1192 = vmatpush1.msra.mxu0 0.0
    %1193 = vmatprep.subr.mxu0 0.0
    %1194 = vmatpush1.msra.mxu0 0.0
    %1195 = vmatprep.subr.mxu0 0.0
    %1196 = vmatpush1.msra.mxu0 0.0
    %1197 = vmatprep.subr.mxu0 0.0
    %1198 = vmatpush1.msra.mxu0 0.0
    %1199 = vmatprep.subr.mxu0 0.0
    %1200 = vmatpush1.msra.mxu0 0.0
    %1201 = vmatprep.subr.mxu0 0.0
    %1202 = vmatpush1.msra.mxu0 0.0
    %1203 = vmatprep.subr.mxu0 0.0
    %1204 = vmatpush1.msra.mxu0 0.0
    %1205 = vmatprep.subr.mxu0 0.0
    %1206 = vmatpush1.msra.mxu0 0.0
    %1207 = vmatprep.subr.mxu0 0.0
    %1208 = vmatpush1.msra.mxu0 0.0
    %1209 = vmatprep.subr.mxu0 0.0
    %1210 = vmatpush1.msra.mxu0 0.0
    %1211 = vmatprep.subr.mxu0 0.0
    %1212 = vmatpush1.msra.mxu0 0.0
    %1213 = vmatprep.subr.mxu0 0.0
    %1214 = vmatpush1.msra.mxu0 0.0
    %1215 = vmatprep.subr.mxu0 0.0
    %1216 = vmatpush1.msra.mxu0 0.0
    %1217 = vmatprep.subr.mxu0 0.0
    %1218 = vmatpush1.msra.mxu0 0.0
    %1219 = vmatprep.subr.mxu0 0.0
    %1220 = vmatpush1.msra.mxu0 0.0
    %1221 = vmatprep.subr.mxu0 0.0
    %1222 = vmatpush1.msra.mxu0 0.0
    %1223 = vmatprep.subr.mxu0 0.0
    %1224 = vmatpush1.msra.mxu0 0.0
    %1225 = vmatprep.subr.mxu0 0.0
    %1226 = vmatpush1.msra.mxu0 0.0
    %1227 = vmatprep.subr.mxu0 0.0
    %1228 = vmatpush1.msra.mxu0 0.0
    %1229 = vmatprep.subr.mxu0 0.0
    %1230 = vmatpush1.msra.mxu0 0.0
    %1231 = vmatprep.subr.mxu0 0.0
    %1232 = vmatpush1.msra.mxu0 0.0
    %1233 = vmatprep.subr.mxu0 0.0
    %1234 = vmatpush1.msra.mxu0 0.0
    %1235 = vmatprep.subr.mxu0 0.0
    %1236 = vmatpush1.msra.mxu0 0.0
    %1237 = vmatprep.subr.mxu0 0.0
    %1238 = vmatpush1.msra.mxu0 0.0
    %1239 = vmatprep.mubr.f32.mxu0 0.0
    %1240 = vmatmul.mubr.f32.gmra.mrb[0].mxu0 %v1173
    %v1241 = vpop.f32.mrb[0].mxu0
    %v1242 = vadd.f32 0.0, %v1241
    %v1243 = vpop.f32.mrb[0].mxu0
    %1244 = vdwg.mxu0
    %v1245 = vrot.slane %v694, 7
    %v1246 = vsel %vm1152, %v1245, %v621
    %v1247 = vrot.slane %v767, 6
    %v1248 = vsel %vm1155, %v1247, %v1246
    %v1249 = vrot.slane %v840, 5
    %v1250 = vsel %vm1158, %v1249, %v1248
    %v1251 = vrot.slane %v913, 4
    %v1252 = vsel %vm1161, %v1251, %v1250
    %v1253 = vrot.slane %v986, 3
    %v1254 = vsel %vm1164, %v1253, %v1252
    %v1255 = vrot.slane %v1059, 2
    %v1256 = vsel %vm1167, %v1255, %v1254
    %v1257 = vrot.slane %v1132, 1
    %v1258 = vsel %vm1170, %v1257, %v1256
    %v1259 = vsel %vm1172, %v1258, 0
    %1261 = vmatprep.subr.mxu0 0.0
    %1262 = vmatpush1.msra.mxu0 %v1135
    %1263 = vmatprep.subr.mxu0 0.0
    %1264 = vmatpush1.msra.mxu0 %v1136
    %1265 = vmatprep.subr.mxu0 0.0
    %1266 = vmatpush1.msra.mxu0 %v1137
    %1267 = vmatprep.subr.mxu0 0.0
    %1268 = vmatpush1.msra.mxu0 %v1138
    %1269 = vmatprep.subr.mxu0 0.0
    %1270 = vmatpush1.msra.mxu0 0.0
    %1271 = vmatprep.subr.mxu0 0.0
    %1272 = vmatpush1.msra.mxu0 0.0
    %1273 = vmatprep.subr.mxu0 0.0
    %1274 = vmatpush1.msra.mxu0 0.0
    %1275 = vmatprep.subr.mxu0 0.0
    %1276 = vmatpush1.msra.mxu0 0.0
    %1277 = vmatprep.subr.mxu0 0.0
    %1278 = vmatpush1.msra.mxu0 0.0
    %1279 = vmatprep.subr.mxu0 0.0
    %1280 = vmatpush1.msra.mxu0 0.0
    %1281 = vmatprep.subr.mxu0 0.0
    %1282 = vmatpush1.msra.mxu0 0.0
    %1283 = vmatprep.subr.mxu0 0.0
    %1284 = vmatpush1.msra.mxu0 0.0
    %1285 = vmatprep.subr.mxu0 0.0
    %1286 = vmatpush1.msra.mxu0 0.0
    %1287 = vmatprep.subr.mxu0 0.0
    %1288 = vmatpush1.msra.mxu0 0.0
    %1289 = vmatprep.subr.mxu0 0.0
    %1290 = vmatpush1.msra.mxu0 0.0
    %1291 = vmatprep.subr.mxu0 0.0
    %1292 = vmatpush1.msra.mxu0 0.0
    %1293 = vmatprep.subr.mxu0 0.0
    %1294 = vmatpush1.msra.mxu0 0.0
    %1295 = vmatprep.subr.mxu0 0.0
    %1296 = vmatpush1.msra.mxu0 0.0
    %1297 = vmatprep.subr.mxu0 0.0
    %1298 = vmatpush1.msra.mxu0 0.0
    %1299 = vmatprep.subr.mxu0 0.0
    %1300 = vmatpush1.msra.mxu0 0.0
    %1301 = vmatprep.subr.mxu0 0.0
    %1302 = vmatpush1.msra.mxu0 0.0
    %1303 = vmatprep.subr.mxu0 0.0
    %1304 = vmatpush1.msra.mxu0 0.0
    %1305 = vmatprep.subr.mxu0 0.0
    %1306 = vmatpush1.msra.mxu0 0.0
    %1307 = vmatprep.subr.mxu0 0.0
    %1308 = vmatpush1.msra.mxu0 0.0
    %1309 = vmatprep.subr.mxu0 0.0
    %1310 = vmatpush1.msra.mxu0 0.0
    %1311 = vmatprep.subr.mxu0 0.0
    %1312 = vmatpush1.msra.mxu0 0.0
    %1313 = vmatprep.subr.mxu0 0.0
    %1314 = vmatpush1.msra.mxu0 0.0
    %1315 = vmatprep.subr.mxu0 0.0
    %1316 = vmatpush1.msra.mxu0 0.0
    %1317 = vmatprep.subr.mxu0 0.0
    %1318 = vmatpush1.msra.mxu0 0.0
    %1319 = vmatprep.subr.mxu0 0.0
    %1320 = vmatpush1.msra.mxu0 0.0
    %1321 = vmatprep.subr.mxu0 0.0
    %1322 = vmatpush1.msra.mxu0 0.0
    %1323 = vmatprep.subr.mxu0 0.0
    %1324 = vmatpush1.msra.mxu0 0.0
    %1325 = vmatprep.mubr.f32.mxu0 0.0
    %1326 = vmatmul.mubr.f32.gmra.mrb[0].mxu0 %v1259
    %v1327 = vpop.f32.mrb[0].mxu0
    %v1328 = vadd.f32 %v1242, %v1327
    %v1329 = vpop.f32.mrb[0].mxu0
    %1330 = vdwg.mxu0
    %v1331 = vld [vmem:[#allocation10] sm:$0xff]
    %v1332 = vld [vmem:[#allocation10 + $0x8] sm:$0xff]
    %v1333 = vld [vmem:[#allocation10 + $0x10] sm:$0xff]
    %v1334 = vld [vmem:[#allocation10 + $0x18] sm:$0xff]
    %v1335 = vrot.slane %v621, 2
    %v1336 = vrot.slane %v694, 1
    %v1337 = vsel %vm1152, %v1336, %v1335
    %v1338 = vsel %vm1155, %v767, %v1337
    %v1339 = vrot.slane %v840, 7
    %v1340 = vsel %vm1158, %v1339, %v1338
    %v1341 = vrot.slane %v913, 6
    %v1342 = vsel %vm1161, %v1341, %v1340
    %v1343 = vrot.slane %v986, 5
    %v1344 = vsel %vm1164, %v1343, %v1342
    %v1345 = vrot.slane %v1059, 4
    %v1346 = vsel %vm1167, %v1345, %v1344
    %v1347 = vrot.slane %v1132, 3
    %v1348 = vsel %vm1170, %v1347, %v1346
    %v1349 = vsel %vm1172, %v1348, 0
    %1351 = vmatprep.subr.mxu0 0.0
    %1352 = vmatpush1.msra.mxu0 %v1331
    %1353 = vmatprep.subr.mxu0 0.0
    %1354 = vmatpush1.msra.mxu0 %v1332
    %1355 = vmatprep.subr.mxu0 0.0
    %1356 = vmatpush1.msra.mxu0 %v1333
    %1357 = vmatprep.subr.mxu0 0.0
    %1358 = vmatpush1.msra.mxu0 %v1334
    %1359 = vmatprep.subr.mxu0 0.0
    %1360 = vmatpush1.msra.mxu0 0.0
    %1361 = vmatprep.subr.mxu0 0.0
    %1362 = vmatpush1.msra.mxu0 0.0
    %1363 = vmatprep.subr.mxu0 0.0
    %1364 = vmatpush1.msra.mxu0 0.0
    %1365 = vmatprep.subr.mxu0 0.0
    %1366 = vmatpush1.msra.mxu0 0.0
    %1367 = vmatprep.subr.mxu0 0.0
    %1368 = vmatpush1.msra.mxu0 0.0
    %1369 = vmatprep.subr.mxu0 0.0
    %1370 = vmatpush1.msra.mxu0 0.0
    %1371 = vmatprep.subr.mxu0 0.0
    %1372 = vmatpush1.msra.mxu0 0.0
    %1373 = vmatprep.subr.mxu0 0.0
    %1374 = vmatpush1.msra.mxu0 0.0
    %1375 = vmatprep.subr.mxu0 0.0
    %1376 = vmatpush1.msra.mxu0 0.0
    %1377 = vmatprep.subr.mxu0 0.0
    %1378 = vmatpush1.msra.mxu0 0.0
    %1379 = vmatprep.subr.mxu0 0.0
    %1380 = vmatpush1.msra.mxu0 0.0
    %1381 = vmatprep.subr.mxu0 0.0
    %1382 = vmatpush1.msra.mxu0 0.0
    %1383 = vmatprep.subr.mxu0 0.0
    %1384 = vmatpush1.msra.mxu0 0.0
    %1385 = vmatprep.subr.mxu0 0.0
    %1386 = vmatpush1.msra.mxu0 0.0
    %1387 = vmatprep.subr.mxu0 0.0
    %1388 = vmatpush1.msra.mxu0 0.0
    %1389 = vmatprep.subr.mxu0 0.0
    %1390 = vmatpush1.msra.mxu0 0.0
    %1391 = vmatprep.subr.mxu0 0.0
    %1392 = vmatpush1.msra.mxu0 0.0
    %1393 = vmatprep.subr.mxu0 0.0
    %1394 = vmatpush1.msra.mxu0 0.0
    %1395 = vmatprep.subr.mxu0 0.0
    %1396 = vmatpush1.msra.mxu0 0.0
    %1397 = vmatprep.subr.mxu0 0.0
    %1398 = vmatpush1.msra.mxu0 0.0
    %1399 = vmatprep.subr.mxu0 0.0
    %1400 = vmatpush1.msra.mxu0 0.0
    %1401 = vmatprep.subr.mxu0 0.0
    %1402 = vmatpush1.msra.mxu0 0.0
    %1403 = vmatprep.subr.mxu0 0.0
    %1404 = vmatpush1.msra.mxu0 0.0
    %1405 = vmatprep.subr.mxu0 0.0
    %1406 = vmatpush1.msra.mxu0 0.0
    %1407 = vmatprep.subr.mxu0 0.0
    %1408 = vmatpush1.msra.mxu0 0.0
    %1409 = vmatprep.subr.mxu0 0.0
    %1410 = vmatpush1.msra.mxu0 0.0
    %1411 = vmatprep.subr.mxu0 0.0
    %1412 = vmatpush1.msra.mxu0 0.0
    %1413 = vmatprep.subr.mxu0 0.0
    %1414 = vmatpush1.msra.mxu0 0.0
    %1415 = vmatprep.mubr.f32.mxu0 0.0
    %1416 = vmatmul.mubr.f32.gmra.mrb[0].mxu0 %v1349
    %v1417 = vpop.f32.mrb[0].mxu0
    %v1418 = vadd.f32 0.0, %v1417
    %v1419 = vpop.f32.mrb[0].mxu0
    %1420 = vdwg.mxu0
    %v1421 = vadd.f32 %v1328, %v1418
    %v1422 = vld [vmem:[%s5] sm:$0x1]
    %v1424 = vlaneseq
    %v1425 = vshrl.u32 %v1424, 7
    %v1426 = vsub.s32 0, %v1425
    %v1427 = vrot.slane %v1422, %v1426
    %v1429 = vadd.f32 %v1421, %v1427
    %vm1430 = vcmp.gt.f32.partialorder %v1429, 0.0
    %v1431 = vmul.f32 %v1429, 0.01
    %v1432 = vsel %vm1430, %v1429, %v1431
    %v1433 = vld [vmem:[#allocation12] sm:$0xff]
    %v1434 = vld [vmem:[#allocation12 + $0x8] sm:$0xff]
    %v1435 = vld [vmem:[#allocation12 + $0x10] sm:$0xff]
    %v1436 = vld [vmem:[#allocation12 + $0x18] sm:$0xff]
    %v1437 = vld [vmem:[#allocation12 + $0x20] sm:$0xff]
    %v1438 = vld [vmem:[#allocation12 + $0x28] sm:$0xff]
    %v1439 = vld [vmem:[#allocation12 + $0x30] sm:$0xff]
    %v1440 = vld [vmem:[#allocation12 + $0x38] sm:$0xff]
    %v1441 = vld [vmem:[%s7] sm:$0x1]
    %v1443 = vlaneseq
    %v1444 = vshrl.u32 %v1443, 7
    %v1445 = vsub.s32 0, %v1444
    %v1446 = vrot.slane %v1441, %v1445
    %vm1448 = vcmask 523264
    %v1450 = vsel %vm1448, %v1432, 0
    %1452 = vmatprep.subr.mxu0 0.0
    %1453 = vmatpush1.msra.mxu0 %v1433
    %1454 = vmatprep.subr.mxu0 0.0
    %1455 = vmatpush1.msra.mxu0 %v1434
    %1456 = vmatprep.subr.mxu0 0.0
    %1457 = vmatpush1.msra.mxu0 %v1435
    %1458 = vmatprep.subr.mxu0 0.0
    %1459 = vmatpush1.msra.mxu0 %v1436
    %1460 = vmatprep.subr.mxu0 0.0
    %1461 = vmatpush1.msra.mxu0 %v1437
    %1462 = vmatprep.subr.mxu0 0.0
    %1463 = vmatpush1.msra.mxu0 %v1438
    %1464 = vmatprep.subr.mxu0 0.0
    %1465 = vmatpush1.msra.mxu0 %v1439
    %1466 = vmatprep.subr.mxu0 0.0
    %1467 = vmatpush1.msra.mxu0 %v1440
    %1468 = vmatprep.subr.mxu0 0.0
    %1469 = vmatpush1.msra.mxu0 0.0
    %1470 = vmatprep.subr.mxu0 0.0
    %1471 = vmatpush1.msra.mxu0 0.0
    %1472 = vmatprep.subr.mxu0 0.0
    %1473 = vmatpush1.msra.mxu0 0.0
    %1474 = vmatprep.subr.mxu0 0.0
    %1475 = vmatpush1.msra.mxu0 0.0
    %1476 = vmatprep.subr.mxu0 0.0
    %1477 = vmatpush1.msra.mxu0 0.0
    %1478 = vmatprep.subr.mxu0 0.0
    %1479 = vmatpush1.msra.mxu0 0.0
    %1480 = vmatprep.subr.mxu0 0.0
    %1481 = vmatpush1.msra.mxu0 0.0
    %1482 = vmatprep.subr.mxu0 0.0
    %1483 = vmatpush1.msra.mxu0 0.0
    %1484 = vmatprep.subr.mxu0 0.0
    %1485 = vmatpush1.msra.mxu0 0.0
    %1486 = vmatprep.subr.mxu0 0.0
    %1487 = vmatpush1.msra.mxu0 0.0
    %1488 = vmatprep.subr.mxu0 0.0
    %1489 = vmatpush1.msra.mxu0 0.0
    %1490 = vmatprep.subr.mxu0 0.0
    %1491 = vmatpush1.msra.mxu0 0.0
    %1492 = vmatprep.subr.mxu0 0.0
    %1493 = vmatpush1.msra.mxu0 0.0
    %1494 = vmatprep.subr.mxu0 0.0
    %1495 = vmatpush1.msra.mxu0 0.0
    %1496 = vmatprep.subr.mxu0 0.0
    %1497 = vmatpush1.msra.mxu0 0.0
    %1498 = vmatprep.subr.mxu0 0.0
    %1499 = vmatpush1.msra.mxu0 0.0
    %1500 = vmatprep.subr.mxu0 0.0
    %1501 = vmatpush1.msra.mxu0 0.0
    %1502 = vmatprep.subr.mxu0 0.0
    %1503 = vmatpush1.msra.mxu0 0.0
    %1504 = vmatprep.subr.mxu0 0.0
    %1505 = vmatpush1.msra.mxu0 0.0
    %1506 = vmatprep.subr.mxu0 0.0
    %1507 = vmatpush1.msra.mxu0 0.0
    %1508 = vmatprep.subr.mxu0 0.0
    %1509 = vmatpush1.msra.mxu0 0.0
    %1510 = vmatprep.subr.mxu0 0.0
    %1511 = vmatpush1.msra.mxu0 0.0
    %1512 = vmatprep.subr.mxu0 0.0
    %1513 = vmatpush1.msra.mxu0 0.0
    %1514 = vmatprep.subr.mxu0 0.0
    %1515 = vmatpush1.msra.mxu0 0.0
    %1516 = vmatprep.mubr.f32.mxu0 0.0
    %1517 = vmatmul.mubr.f32.gmra.mrb[0].mxu0 %v1450
    %v1518 = vpop.f32.mrb[0].mxu0
    %v1519 = vadd.f32 %v1446, %v1518
    %v1520 = vpop.f32.mrb[0].mxu0
    %1521 = vdwg.mxu0
    %1522 = vst [vmem:[#allocation13] sm:$0xff] %v1519
    // Predicated region
    $region50: #{tpu_custom_call.1} parent=1 // pred_check
      _
    $region51: #{tpu_custom_call.1} parent=1 // pred_check_branch
      %1524 = sbr.rel (0) target = $region53
    $region52: #{tpu_custom_call.1} parent=1 // pred_region
      %s1526 = ssub.s32 128, 128
      %1527 = vsyncadd [#allocation6], %s1526
      %s1529 = sshll.u32 [#allocation13], 4
      %s1530 = int_to_ptr.vmem [resolvable:$true] %s1529
      %1532 = dma.vmem_to_hbm [thread:$0]  %s1530, 128, %s8, [#allocation6]
    $region53: #{tpu_custom_call.1} parent=1 // pred_fallthru
      _
    // Predicated region
    $region54: #{tpu_custom_call.1} parent=1 // pred_check
      _
    $region55: #{tpu_custom_call.1} parent=1 // pred_check_branch
      %1534 = sbr.rel (0) target = $region57
    $region56: #{tpu_custom_call.1} parent=1 // pred_region
      %1535 = dma.done [#allocation6], 128
    $region57: #{tpu_custom_call.1} parent=1 // pred_fallthru
      _
    %1536 = vsyncpa [#allocation5], 1
    %1537 = vsyncpa [#allocation8], 1
    %1538 = vsyncpa [#allocation11], 1
    %1539 = vsyncpa [#allocation6], 1

</llo_original>
